<compile_context>
chip_gen: v7x
topology: tpu7x:2x2x1
jax: 0.10.0
libtpu: 0.0.40
codegen_flags: <defaults>
</compile_context>

<pallas_src>
import jax
import jax.numpy as jnp
from jax.experimental import pallas as pl
from jax.experimental.pallas import tpu as pltpu

# ---------------- model configuration (small, self-consistent shapes) ---------
B = 128                         # batch (raised per perf review to fill MXU rows)
L = 16                          # reference.size(1)
C = 3                           # reference.size(2)
UNROLLED = L * C                # 48  == unrolled_dim
HIDDEN = [16, 32, 64, 64, 64]   # hidden_dims (small stand-in for [100,200,400,750,1500])
DIMS = HIDDEN + [UNROLLED]      # per-linear (in, out) chain -> 5 linears
NLAYERS = 5
PAD = 128                       # lane-dense feature padding
BN_EPS = 1e-5

# NOTE: mha_res / ff / pos_emb are built in Decoder.__init__ but never used in forward.


# ---------------- the fused decoder forward kernel -----------------------------
def decoder_kernel(x_ref, w_ref, v_ref, o_ref):
    # x_ref : (B, 128)  f32   input, lanes >= HIDDEN[0] are zero
    # w_ref : (5, 128, 128) bf16  weight slab, w_ref[i][:din,:dout] is layer i (in,out)
    # v_ref : (16, 128) f32   rows 0-4: biases, 5-8: BN gammas, 9-12: BN betas
    # o_ref : (B, 128)  f32   lanes [0, UNROLLED) hold the reconstruction
    h = x_ref[...]                                            # f32 activations
    for i in range(NLAYERS - 1):
        # Linear: bf16 operands, f32 accumulation on the MXU.
        y = jnp.dot(h.astype(jnp.bfloat16), w_ref[i],
                    preferred_element_type=jnp.float32) + v_ref[pl.ds(i, 1), :]
        # BatchNorm1d (training mode: batch mean, biased variance), fused into one FMA.
        mean = jnp.mean(y, axis=0, keepdims=True)
        var = jnp.mean((y - mean) * (y - mean), axis=0, keepdims=True)
        scale = v_ref[pl.ds(5 + i, 1), :] * jax.lax.rsqrt(var + BN_EPS)
        shift = v_ref[pl.ds(9 + i, 1), :] - mean * scale
        y = y * scale + shift
        # SiLU in f32.
        h = y * (1.0 / (1.0 + jnp.exp(-y)))
    # Final Linear -> ELU, stored as one unmasked 128-lane-wide write.
    y = jnp.dot(h.astype(jnp.bfloat16), w_ref[NLAYERS - 1],
                preferred_element_type=jnp.float32) + v_ref[pl.ds(NLAYERS - 1, 1), :]
    o_ref[...] = jnp.where(y > 0.0, y, jnp.exp(y) - 1.0)


# ---------------- parameter construction & packing -----------------------------
def init_params(key):
    """Per-layer params: W (in,out) f32 (transposed vs torch), b, gamma, beta."""
    Ws, bs, gs, bts = [], [], [], []
    for i in range(NLAYERS):
        din, dout = DIMS[i], DIMS[i + 1]
        kw, kb, kg, kbt, key = jax.random.split(key, 5)
        Ws.append(jax.random.normal(kw, (din, dout), jnp.float32) / jnp.sqrt(float(din)))
        bs.append(0.1 * jax.random.normal(kb, (dout,), jnp.float32))
        if i < NLAYERS - 1:  # BN follows the first 4 linears only
            gs.append(1.0 + 0.1 * jax.random.normal(kg, (dout,), jnp.float32))
            bts.append(0.1 * jax.random.normal(kbt, (dout,), jnp.float32))
    return Ws, bs, gs, bts


def pack_params(Ws, bs, gs, bts):
    """Pack everything into one bf16 weight slab and one f32 vector slab."""
    w_slab = jnp.zeros((NLAYERS, PAD, PAD), jnp.float32)
    v_slab = jnp.zeros((16, PAD), jnp.float32)
    for i in range(NLAYERS):
        din, dout = DIMS[i], DIMS[i + 1]
        w_slab = w_slab.at[i, :din, :dout].set(Ws[i])
        v_slab = v_slab.at[i, :dout].set(bs[i])                 # rows 0-4: biases
    for i in range(NLAYERS - 1):
        dout = DIMS[i + 1]
        v_slab = v_slab.at[5 + i, :dout].set(gs[i])             # rows 5-8: gammas
        v_slab = v_slab.at[9 + i, :dout].set(bts[i])            # rows 9-12: betas
    return w_slab.astype(jnp.bfloat16), v_slab


# ---------------- wrapper -------------------------------------------------------
def decoder_forward(x, w_slab, v_slab):
    """x: (B, HIDDEN[0]) f32 latent input; returns reconstruction (B, L, C)."""
    b = x.shape[0]
    x_pad = jnp.zeros((b, PAD), jnp.float32).at[:, : x.shape[1]].set(x)
    vmem = pl.BlockSpec(memory_space=pltpu.MemorySpace.VMEM)
    out = pl.pallas_call(
        decoder_kernel,
        out_shape=jax.ShapeDtypeStruct((b, PAD), jnp.float32),
        in_specs=[vmem, vmem, vmem],
        out_specs=vmem,
    )(x_pad, w_slab, v_slab)
    # == x.view(x.size(0), sizes[1], sizes[2])
    return out[:, :UNROLLED].reshape(b, L, C)


# ---------------- pure-JAX reference (same bf16-matmul numerics) ----------------
def decoder_reference(x, Ws, bs, gs, bts):
    h = x
    for i in range(NLAYERS - 1):
        y = jnp.dot(h.astype(jnp.bfloat16), Ws[i].astype(jnp.bfloat16),
                    preferred_element_type=jnp.float32) + bs[i]
        m = jnp.mean(y, axis=0, keepdims=True)
        v = jnp.mean((y - m) ** 2, axis=0, keepdims=True)
        y = gs[i] * (y - m) * jax.lax.rsqrt(v + BN_EPS) + bts[i]
        h = y * (1.0 / (1.0 + jnp.exp(-y)))
    y = jnp.dot(h.astype(jnp.bfloat16), Ws[NLAYERS - 1].astype(jnp.bfloat16),
                preferred_element_type=jnp.float32) + bs[NLAYERS - 1]
    y = jnp.where(y > 0.0, y, jnp.exp(y) - 1.0)
    return y.reshape(x.shape[0], L, C)


# ---------------- main ----------------------------------------------------------
if __name__ == "__main__":
    key = jax.random.PRNGKey(0)
    k_x, k_p = jax.random.split(key)

    x = jax.random.normal(k_x, (B, HIDDEN[0]), jnp.float32)   # 'BD' latent input
    Ws, bs, gs, bts = init_params(k_p)
    w_slab, v_slab = pack_params(Ws, bs, gs, bts)

    recon = decoder_forward(x, w_slab, v_slab)
    jax.block_until_ready(recon)

    # sanity check against a pure-JAX reference with identical bf16-matmul numerics
    ref = decoder_reference(x, Ws, bs, gs, bts)
    assert recon.shape == (B, L, C)
    assert jnp.allclose(recon, ref, atol=2e-3, rtol=2e-3), float(jnp.max(jnp.abs(recon - ref)))

    print("KERNEL_OK")
</pallas_src>

<mosaic_0001>
module attributes {stable_mosaic.version = 11 : i64} {
  func.func @decoder_kernel(%arg0: memref<128x128xf32, #tpu.memory_space<vmem>>, %arg1: memref<5x128x128xbf16, #tpu.memory_space<vmem>>, %arg2: memref<16x128xf32, #tpu.memory_space<vmem>>, %arg3: memref<128x128xf32, #tpu.memory_space<vmem>>) attributes {dimension_semantics = [], scalar_prefetch = 0 : i64, scratch_operands = 0 : i64, tpu.core_type = #tpu.core_type<tc>} {
    %c0 = arith.constant 0 : index
    %c0_0 = arith.constant 0 : index
    %0 = vector.load %arg0[%c0, %c0_0] : memref<128x128xf32, #tpu.memory_space<vmem>>, vector<128x128xf32>
    %1 = arith.truncf %0 : vector<128x128xf32> to vector<128x128xbf16>
    %c0_1 = arith.constant 0 : index
    %c0_2 = arith.constant 0 : index
    %c0_3 = arith.constant 0 : index
    %2 = vector.load %arg1[%c0_1, %c0_2, %c0_3] : memref<5x128x128xbf16, #tpu.memory_space<vmem>>, vector<1x128x128xbf16>
    %3 = vector.shape_cast %2 : vector<1x128x128xbf16> to vector<128x128xbf16>
    %cst = arith.constant dense<0.000000e+00> : vector<128x128xf32>
    %4 = tpu.matmul %1, %3, %cst {dimension_numbers = #tpu.dot_dimension_numbers<[1], [0], [0], [1], [0, 0, 1, 1], [], []>} : vector<128x128xbf16>, vector<128x128xbf16>, vector<128x128xf32> -> vector<128x128xf32>
    %c0_4 = arith.constant 0 : index
    %c0_5 = arith.constant 0 : index
    %5 = vector.load %arg2[%c0_4, %c0_5] : memref<16x128xf32, #tpu.memory_space<vmem>>, vector<1x128xf32>
    %6 = vector.broadcast %5 : vector<1x128xf32> to vector<128x128xf32>
    %7 = arith.addf %4, %6 : vector<128x128xf32>
    %cst_6 = arith.constant dense<0.000000e+00> : vector<128xf32>
    %8 = vector.multi_reduction <add>, %7, %cst_6 [0] : vector<128x128xf32> to vector<128xf32>
    %9 = vector.shape_cast %8 : vector<128xf32> to vector<1x128xf32>
    %cst_7 = arith.constant 1.280000e+02 : f32
    %10 = vector.broadcast %cst_7 : f32 to vector<1x128xf32>
    %11 = arith.divf %9, %10 : vector<1x128xf32>
    %12 = vector.broadcast %11 : vector<1x128xf32> to vector<128x128xf32>
    %13 = arith.subf %7, %12 : vector<128x128xf32>
    %14 = vector.broadcast %11 : vector<1x128xf32> to vector<128x128xf32>
    %15 = arith.subf %7, %14 : vector<128x128xf32>
    %16 = arith.mulf %13, %15 : vector<128x128xf32>
    %cst_8 = arith.constant dense<0.000000e+00> : vector<128xf32>
    %17 = vector.multi_reduction <add>, %16, %cst_8 [0] : vector<128x128xf32> to vector<128xf32>
    %18 = vector.shape_cast %17 : vector<128xf32> to vector<1x128xf32>
    %cst_9 = arith.constant 1.280000e+02 : f32
    %19 = vector.broadcast %cst_9 : f32 to vector<1x128xf32>
    %20 = arith.divf %18, %19 : vector<1x128xf32>
    %c5 = arith.constant 5 : index
    %c0_10 = arith.constant 0 : index
    %21 = vector.load %arg2[%c5, %c0_10] : memref<16x128xf32, #tpu.memory_space<vmem>>, vector<1x128xf32>
    %cst_11 = arith.constant 9.99999974E-6 : f32
    %22 = vector.broadcast %cst_11 : f32 to vector<1x128xf32>
    %23 = arith.addf %20, %22 : vector<1x128xf32>
    %24 = math.rsqrt %23 : vector<1x128xf32>
    %25 = arith.mulf %21, %24 : vector<1x128xf32>
    %c9 = arith.constant 9 : index
    %c0_12 = arith.constant 0 : index
    %26 = vector.load %arg2[%c9, %c0_12] : memref<16x128xf32, #tpu.memory_space<vmem>>, vector<1x128xf32>
    %27 = arith.mulf %11, %25 : vector<1x128xf32>
    %28 = arith.subf %26, %27 : vector<1x128xf32>
    %29 = vector.broadcast %25 : vector<1x128xf32> to vector<128x128xf32>
    %30 = arith.mulf %7, %29 : vector<128x128xf32>
    %31 = vector.broadcast %28 : vector<1x128xf32> to vector<128x128xf32>
    %32 = arith.addf %30, %31 : vector<128x128xf32>
    %cst_13 = arith.constant 0.000000e+00 : f32
    %33 = vector.broadcast %cst_13 : f32 to vector<128x128xf32>
    %34 = arith.subf %33, %32 : vector<128x128xf32>
    %35 = math.exp %34 : vector<128x128xf32>
    %cst_14 = arith.constant 1.000000e+00 : f32
    %36 = vector.broadcast %cst_14 : f32 to vector<128x128xf32>
    %37 = arith.addf %36, %35 : vector<128x128xf32>
    %cst_15 = arith.constant 1.000000e+00 : f32
    %38 = vector.broadcast %cst_15 : f32 to vector<128x128xf32>
    %39 = arith.divf %38, %37 : vector<128x128xf32>
    %40 = arith.mulf %32, %39 : vector<128x128xf32>
    %41 = arith.truncf %40 : vector<128x128xf32> to vector<128x128xbf16>
    %c1 = arith.constant 1 : index
    %c0_16 = arith.constant 0 : index
    %c0_17 = arith.constant 0 : index
    %42 = vector.load %arg1[%c1, %c0_16, %c0_17] : memref<5x128x128xbf16, #tpu.memory_space<vmem>>, vector<1x128x128xbf16>
    %43 = vector.shape_cast %42 : vector<1x128x128xbf16> to vector<128x128xbf16>
    %cst_18 = arith.constant dense<0.000000e+00> : vector<128x128xf32>
    %44 = tpu.matmul %41, %43, %cst_18 {dimension_numbers = #tpu.dot_dimension_numbers<[1], [0], [0], [1], [0, 0, 1, 1], [], []>} : vector<128x128xbf16>, vector<128x128xbf16>, vector<128x128xf32> -> vector<128x128xf32>
    %c1_19 = arith.constant 1 : index
    %c0_20 = arith.constant 0 : index
    %45 = vector.load %arg2[%c1_19, %c0_20] : memref<16x128xf32, #tpu.memory_space<vmem>>, vector<1x128xf32>
    %46 = vector.broadcast %45 : vector<1x128xf32> to vector<128x128xf32>
    %47 = arith.addf %44, %46 : vector<128x128xf32>
    %cst_21 = arith.constant dense<0.000000e+00> : vector<128xf32>
    %48 = vector.multi_reduction <add>, %47, %cst_21 [0] : vector<128x128xf32> to vector<128xf32>
    %49 = vector.shape_cast %48 : vector<128xf32> to vector<1x128xf32>
    %cst_22 = arith.constant 1.280000e+02 : f32
    %50 = vector.broadcast %cst_22 : f32 to vector<1x128xf32>
    %51 = arith.divf %49, %50 : vector<1x128xf32>
    %52 = vector.broadcast %51 : vector<1x128xf32> to vector<128x128xf32>
    %53 = arith.subf %47, %52 : vector<128x128xf32>
    %54 = vector.broadcast %51 : vector<1x128xf32> to vector<128x128xf32>
    %55 = arith.subf %47, %54 : vector<128x128xf32>
    %56 = arith.mulf %53, %55 : vector<128x128xf32>
    %cst_23 = arith.constant dense<0.000000e+00> : vector<128xf32>
    %57 = vector.multi_reduction <add>, %56, %cst_23 [0] : vector<128x128xf32> to vector<128xf32>
    %58 = vector.shape_cast %57 : vector<128xf32> to vector<1x128xf32>
    %cst_24 = arith.constant 1.280000e+02 : f32
    %59 = vector.broadcast %cst_24 : f32 to vector<1x128xf32>
    %60 = arith.divf %58, %59 : vector<1x128xf32>
    %c6 = arith.constant 6 : index
    %c0_25 = arith.constant 0 : index
    %61 = vector.load %arg2[%c6, %c0_25] : memref<16x128xf32, #tpu.memory_space<vmem>>, vector<1x128xf32>
    %cst_26 = arith.constant 9.99999974E-6 : f32
    %62 = vector.broadcast %cst_26 : f32 to vector<1x128xf32>
    %63 = arith.addf %60, %62 : vector<1x128xf32>
    %64 = math.rsqrt %63 : vector<1x128xf32>
    %65 = arith.mulf %61, %64 : vector<1x128xf32>
    %c10 = arith.constant 10 : index
    %c0_27 = arith.constant 0 : index
    %66 = vector.load %arg2[%c10, %c0_27] : memref<16x128xf32, #tpu.memory_space<vmem>>, vector<1x128xf32>
    %67 = arith.mulf %51, %65 : vector<1x128xf32>
    %68 = arith.subf %66, %67 : vector<1x128xf32>
    %69 = vector.broadcast %65 : vector<1x128xf32> to vector<128x128xf32>
    %70 = arith.mulf %47, %69 : vector<128x128xf32>
    %71 = vector.broadcast %68 : vector<1x128xf32> to vector<128x128xf32>
    %72 = arith.addf %70, %71 : vector<128x128xf32>
    %cst_28 = arith.constant 0.000000e+00 : f32
    %73 = vector.broadcast %cst_28 : f32 to vector<128x128xf32>
    %74 = arith.subf %73, %72 : vector<128x128xf32>
    %75 = math.exp %74 : vector<128x128xf32>
    %cst_29 = arith.constant 1.000000e+00 : f32
    %76 = vector.broadcast %cst_29 : f32 to vector<128x128xf32>
    %77 = arith.addf %76, %75 : vector<128x128xf32>
    %cst_30 = arith.constant 1.000000e+00 : f32
    %78 = vector.broadcast %cst_30 : f32 to vector<128x128xf32>
    %79 = arith.divf %78, %77 : vector<128x128xf32>
    %80 = arith.mulf %72, %79 : vector<128x128xf32>
    %81 = arith.truncf %80 : vector<128x128xf32> to vector<128x128xbf16>
    %c2 = arith.constant 2 : index
    %c0_31 = arith.constant 0 : index
    %c0_32 = arith.constant 0 : index
    %82 = vector.load %arg1[%c2, %c0_31, %c0_32] : memref<5x128x128xbf16, #tpu.memory_space<vmem>>, vector<1x128x128xbf16>
    %83 = vector.shape_cast %82 : vector<1x128x128xbf16> to vector<128x128xbf16>
    %cst_33 = arith.constant dense<0.000000e+00> : vector<128x128xf32>
    %84 = tpu.matmul %81, %83, %cst_33 {dimension_numbers = #tpu.dot_dimension_numbers<[1], [0], [0], [1], [0, 0, 1, 1], [], []>} : vector<128x128xbf16>, vector<128x128xbf16>, vector<128x128xf32> -> vector<128x128xf32>
    %c2_34 = arith.constant 2 : index
    %c0_35 = arith.constant 0 : index
    %85 = vector.load %arg2[%c2_34, %c0_35] : memref<16x128xf32, #tpu.memory_space<vmem>>, vector<1x128xf32>
    %86 = vector.broadcast %85 : vector<1x128xf32> to vector<128x128xf32>
    %87 = arith.addf %84, %86 : vector<128x128xf32>
    %cst_36 = arith.constant dense<0.000000e+00> : vector<128xf32>
    %88 = vector.multi_reduction <add>, %87, %cst_36 [0] : vector<128x128xf32> to vector<128xf32>
    %89 = vector.shape_cast %88 : vector<128xf32> to vector<1x128xf32>
    %cst_37 = arith.constant 1.280000e+02 : f32
    %90 = vector.broadcast %cst_37 : f32 to vector<1x128xf32>
    %91 = arith.divf %89, %90 : vector<1x128xf32>
    %92 = vector.broadcast %91 : vector<1x128xf32> to vector<128x128xf32>
    %93 = arith.subf %87, %92 : vector<128x128xf32>
    %94 = vector.broadcast %91 : vector<1x128xf32> to vector<128x128xf32>
    %95 = arith.subf %87, %94 : vector<128x128xf32>
    %96 = arith.mulf %93, %95 : vector<128x128xf32>
    %cst_38 = arith.constant dense<0.000000e+00> : vector<128xf32>
    %97 = vector.multi_reduction <add>, %96, %cst_38 [0] : vector<128x128xf32> to vector<128xf32>
    %98 = vector.shape_cast %97 : vector<128xf32> to vector<1x128xf32>
    %cst_39 = arith.constant 1.280000e+02 : f32
    %99 = vector.broadcast %cst_39 : f32 to vector<1x128xf32>
    %100 = arith.divf %98, %99 : vector<1x128xf32>
    %c7 = arith.constant 7 : index
    %c0_40 = arith.constant 0 : index
    %101 = vector.load %arg2[%c7, %c0_40] : memref<16x128xf32, #tpu.memory_space<vmem>>, vector<1x128xf32>
    %cst_41 = arith.constant 9.99999974E-6 : f32
    %102 = vector.broadcast %cst_41 : f32 to vector<1x128xf32>
    %103 = arith.addf %100, %102 : vector<1x128xf32>
    %104 = math.rsqrt %103 : vector<1x128xf32>
    %105 = arith.mulf %101, %104 : vector<1x128xf32>
    %c11 = arith.constant 11 : index
    %c0_42 = arith.constant 0 : index
    %106 = vector.load %arg2[%c11, %c0_42] : memref<16x128xf32, #tpu.memory_space<vmem>>, vector<1x128xf32>
    %107 = arith.mulf %91, %105 : vector<1x128xf32>
    %108 = arith.subf %106, %107 : vector<1x128xf32>
    %109 = vector.broadcast %105 : vector<1x128xf32> to vector<128x128xf32>
    %110 = arith.mulf %87, %109 : vector<128x128xf32>
    %111 = vector.broadcast %108 : vector<1x128xf32> to vector<128x128xf32>
    %112 = arith.addf %110, %111 : vector<128x128xf32>
    %cst_43 = arith.constant 0.000000e+00 : f32
    %113 = vector.broadcast %cst_43 : f32 to vector<128x128xf32>
    %114 = arith.subf %113, %112 : vector<128x128xf32>
    %115 = math.exp %114 : vector<128x128xf32>
    %cst_44 = arith.constant 1.000000e+00 : f32
    %116 = vector.broadcast %cst_44 : f32 to vector<128x128xf32>
    %117 = arith.addf %116, %115 : vector<128x128xf32>
    %cst_45 = arith.constant 1.000000e+00 : f32
    %118 = vector.broadcast %cst_45 : f32 to vector<128x128xf32>
    %119 = arith.divf %118, %117 : vector<128x128xf32>
    %120 = arith.mulf %112, %119 : vector<128x128xf32>
    %121 = arith.truncf %120 : vector<128x128xf32> to vector<128x128xbf16>
    %c3 = arith.constant 3 : index
    %c0_46 = arith.constant 0 : index
    %c0_47 = arith.constant 0 : index
    %122 = vector.load %arg1[%c3, %c0_46, %c0_47] : memref<5x128x128xbf16, #tpu.memory_space<vmem>>, vector<1x128x128xbf16>
    %123 = vector.shape_cast %122 : vector<1x128x128xbf16> to vector<128x128xbf16>
    %cst_48 = arith.constant dense<0.000000e+00> : vector<128x128xf32>
    %124 = tpu.matmul %121, %123, %cst_48 {dimension_numbers = #tpu.dot_dimension_numbers<[1], [0], [0], [1], [0, 0, 1, 1], [], []>} : vector<128x128xbf16>, vector<128x128xbf16>, vector<128x128xf32> -> vector<128x128xf32>
    %c3_49 = arith.constant 3 : index
    %c0_50 = arith.constant 0 : index
    %125 = vector.load %arg2[%c3_49, %c0_50] : memref<16x128xf32, #tpu.memory_space<vmem>>, vector<1x128xf32>
    %126 = vector.broadcast %125 : vector<1x128xf32> to vector<128x128xf32>
    %127 = arith.addf %124, %126 : vector<128x128xf32>
    %cst_51 = arith.constant dense<0.000000e+00> : vector<128xf32>
    %128 = vector.multi_reduction <add>, %127, %cst_51 [0] : vector<128x128xf32> to vector<128xf32>
    %129 = vector.shape_cast %128 : vector<128xf32> to vector<1x128xf32>
    %cst_52 = arith.constant 1.280000e+02 : f32
    %130 = vector.broadcast %cst_52 : f32 to vector<1x128xf32>
    %131 = arith.divf %129, %130 : vector<1x128xf32>
    %132 = vector.broadcast %131 : vector<1x128xf32> to vector<128x128xf32>
    %133 = arith.subf %127, %132 : vector<128x128xf32>
    %134 = vector.broadcast %131 : vector<1x128xf32> to vector<128x128xf32>
    %135 = arith.subf %127, %134 : vector<128x128xf32>
    %136 = arith.mulf %133, %135 : vector<128x128xf32>
    %cst_53 = arith.constant dense<0.000000e+00> : vector<128xf32>
    %137 = vector.multi_reduction <add>, %136, %cst_53 [0] : vector<128x128xf32> to vector<128xf32>
    %138 = vector.shape_cast %137 : vector<128xf32> to vector<1x128xf32>
    %cst_54 = arith.constant 1.280000e+02 : f32
    %139 = vector.broadcast %cst_54 : f32 to vector<1x128xf32>
    %140 = arith.divf %138, %139 : vector<1x128xf32>
    %c8 = arith.constant 8 : index
    %c0_55 = arith.constant 0 : index
    %141 = vector.load %arg2[%c8, %c0_55] : memref<16x128xf32, #tpu.memory_space<vmem>>, vector<1x128xf32>
    %cst_56 = arith.constant 9.99999974E-6 : f32
    %142 = vector.broadcast %cst_56 : f32 to vector<1x128xf32>
    %143 = arith.addf %140, %142 : vector<1x128xf32>
    %144 = math.rsqrt %143 : vector<1x128xf32>
    %145 = arith.mulf %141, %144 : vector<1x128xf32>
    %c12 = arith.constant 12 : index
    %c0_57 = arith.constant 0 : index
    %146 = vector.load %arg2[%c12, %c0_57] : memref<16x128xf32, #tpu.memory_space<vmem>>, vector<1x128xf32>
    %147 = arith.mulf %131, %145 : vector<1x128xf32>
    %148 = arith.subf %146, %147 : vector<1x128xf32>
    %149 = vector.broadcast %145 : vector<1x128xf32> to vector<128x128xf32>
    %150 = arith.mulf %127, %149 : vector<128x128xf32>
    %151 = vector.broadcast %148 : vector<1x128xf32> to vector<128x128xf32>
    %152 = arith.addf %150, %151 : vector<128x128xf32>
    %cst_58 = arith.constant 0.000000e+00 : f32
    %153 = vector.broadcast %cst_58 : f32 to vector<128x128xf32>
    %154 = arith.subf %153, %152 : vector<128x128xf32>
    %155 = math.exp %154 : vector<128x128xf32>
    %cst_59 = arith.constant 1.000000e+00 : f32
    %156 = vector.broadcast %cst_59 : f32 to vector<128x128xf32>
    %157 = arith.addf %156, %155 : vector<128x128xf32>
    %cst_60 = arith.constant 1.000000e+00 : f32
    %158 = vector.broadcast %cst_60 : f32 to vector<128x128xf32>
    %159 = arith.divf %158, %157 : vector<128x128xf32>
    %160 = arith.mulf %152, %159 : vector<128x128xf32>
    %161 = arith.truncf %160 : vector<128x128xf32> to vector<128x128xbf16>
    %c4 = arith.constant 4 : index
    %c0_61 = arith.constant 0 : index
    %c0_62 = arith.constant 0 : index
    %162 = vector.load %arg1[%c4, %c0_61, %c0_62] : memref<5x128x128xbf16, #tpu.memory_space<vmem>>, vector<1x128x128xbf16>
    %163 = vector.shape_cast %162 : vector<1x128x128xbf16> to vector<128x128xbf16>
    %cst_63 = arith.constant dense<0.000000e+00> : vector<128x128xf32>
    %164 = tpu.matmul %161, %163, %cst_63 {dimension_numbers = #tpu.dot_dimension_numbers<[1], [0], [0], [1], [0, 0, 1, 1], [], []>} : vector<128x128xbf16>, vector<128x128xbf16>, vector<128x128xf32> -> vector<128x128xf32>
    %c4_64 = arith.constant 4 : index
    %c0_65 = arith.constant 0 : index
    %165 = vector.load %arg2[%c4_64, %c0_65] : memref<16x128xf32, #tpu.memory_space<vmem>>, vector<1x128xf32>
    %166 = vector.broadcast %165 : vector<1x128xf32> to vector<128x128xf32>
    %167 = arith.addf %164, %166 : vector<128x128xf32>
    %cst_66 = arith.constant 0.000000e+00 : f32
    %168 = vector.broadcast %cst_66 : f32 to vector<128x128xf32>
    %169 = arith.cmpf ogt, %167, %168 : vector<128x128xf32>
    %170 = math.exp %167 : vector<128x128xf32>
    %cst_67 = arith.constant 1.000000e+00 : f32
    %171 = vector.broadcast %cst_67 : f32 to vector<128x128xf32>
    %172 = arith.subf %170, %171 : vector<128x128xf32>
    %173 = arith.select %169, %167, %172 : vector<128x128xi1>, vector<128x128xf32>
    %c0_68 = arith.constant 0 : index
    %c0_69 = arith.constant 0 : index
    %174 = vector.load %arg3[%c0_68, %c0_69] : memref<128x128xf32, #tpu.memory_space<vmem>>, vector<128x128xf32>
    tpu.vector_store %arg3[%c0_68, %c0_69], %173 {strides = array<i32>} : memref<128x128xf32, #tpu.memory_space<vmem>>, vector<128x128xf32>,
    return
  }
}

</mosaic_0001>

<llo_original>
// kernel: tpu_custom_call.1
$region0: #{tpu_custom_call.1}
  #allocation0 [shape = 'u32[]', space=smem, size = 0x4, offset = 0x4, fixed_abs, tag = 'smem constant byte address 0x4 - core index']
  #allocation1 [shape = 'u32[144,128]{1,0:T(1,128)}', space=vmem, size = 0x12000, scoped, tag = 'internal scratch']
  %s0 = inlined_call_operand.hbm [shape: f32[128,128], index: 0, kind: input, shape index: {}]
  %s1 = inlined_call_operand.hbm [shape: bf16[5,128,128], index: 1, kind: input, shape index: {}]
  %s2 = inlined_call_operand.hbm [shape: f32[16,128], index: 2, kind: input, shape index: {}]
  %s3 = inlined_call_operand.hbm [shape: f32[128,128], index: 3, kind: output, shape index: {}]
  %s4 = sld [smem:[#allocation0]]
  $region34: #{tpu_custom_call.1} parent=0
    _
  %s6 = ssub.s32 1, %s4
  %s7 = scalar_select 0, %s6, %s4
  $region1: #{tpu_custom_call.1} parent=0
    #allocation2 [shape = 'u8[65536]{0}', space=vmem, size = 0x10000, scoped, tag = 'input window, operand 0, single buffered']
    #allocation3 [shape = 's32[1]{0}', space=sflag, size = 0x4, scoped, tag = 'scoped memory for tpu_custom_call.1']
    #allocation4 [shape = 's32[1]{0}', space=sflag, size = 0x4, scoped, tag = 'scoped memory for tpu_custom_call.1']
    #allocation5 [shape = 'u8[163840]{0}', space=vmem, size = 0x28000, scoped, tag = 'input window, operand 1, single buffered']
    #allocation6 [shape = 's32[1]{0}', space=sflag, size = 0x4, scoped, tag = 'scoped memory for tpu_custom_call.1']
    #allocation7 [shape = 'u8[8192]{0}', space=vmem, size = 0x2000, scoped, tag = 'input window, operand 2, single buffered']
    #allocation8 [shape = 'u8[65536]{0}', space=vmem, size = 0x10000, scoped, tag = 'output window, operand 0, single buffered']
    %8 = vsyncpa [#allocation3], 0
    %9 = vsyncpa [#allocation6], 0
    %10 = vsyncpa [#allocation4], 0
    // Predicated region
    $region2: #{tpu_custom_call.1} parent=1 // pred_check
      _
    $region3: #{tpu_custom_call.1} parent=1 // pred_check_branch
      %12 = sbr.rel (0) target = $region5
    $region4: #{tpu_custom_call.1} parent=1 // pred_region
      %s14 = ssub.s32 2048, 2048
      %15 = vsyncadd [#allocation3], %s14
      %s16 = sshll.u32 [#allocation2], 4
      %s17 = int_to_ptr.vmem [resolvable:$true] %s16
      %22 = dma.hbm_to_vmem [thread:$0]  %s0, 2048, %s17, [#allocation3], 128, 128, 8
    $region5: #{tpu_custom_call.1} parent=1 // pred_fallthru
      _
    // Predicated region
    $region6: #{tpu_custom_call.1} parent=1 // pred_check
      _
    $region7: #{tpu_custom_call.1} parent=1 // pred_check_branch
      %24 = sbr.rel (0) target = $region9
    $region8: #{tpu_custom_call.1} parent=1 // pred_region
      %s26 = ssub.s32 5120, 5120
      %27 = vsyncadd [#allocation6], %s26
      %s28 = sshll.u32 [#allocation5], 4
      %s29 = int_to_ptr.vmem [resolvable:$true] %s28
      %34 = dma.hbm_to_vmem [thread:$0]  %s1, 5120, %s29, [#allocation6], 64, 64, 4
    $region9: #{tpu_custom_call.1} parent=1 // pred_fallthru
      _
    // Predicated region
    $region10: #{tpu_custom_call.1} parent=1 // pred_check
      _
    $region11: #{tpu_custom_call.1} parent=1 // pred_check_branch
      %36 = sbr.rel (0) target = $region13
    $region12: #{tpu_custom_call.1} parent=1 // pred_region
      %s38 = ssub.s32 256, 256
      %39 = vsyncadd [#allocation6], %s38
      %s40 = sshll.u32 [#allocation7], 4
      %s41 = int_to_ptr.vmem [resolvable:$true] %s40
      %46 = dma.hbm_to_vmem [thread:$0]  %s2, 256, %s41, [#allocation6], 128, 128, 8
    $region13: #{tpu_custom_call.1} parent=1 // pred_fallthru
      _
    // Predicated region
    $region14: #{tpu_custom_call.1} parent=1 // pred_check
      _
    $region15: #{tpu_custom_call.1} parent=1 // pred_check_branch
      %48 = sbr.rel (0) target = $region17
    $region16: #{tpu_custom_call.1} parent=1 // pred_region
      %49 = dma.done [#allocation3], 2048
    $region17: #{tpu_custom_call.1} parent=1 // pred_fallthru
      _
    // Predicated region
    $region18: #{tpu_custom_call.1} parent=1 // pred_check
      _
    $region19: #{tpu_custom_call.1} parent=1 // pred_check_branch
      %51 = sbr.rel (0) target = $region21
    $region20: #{tpu_custom_call.1} parent=1 // pred_region
      %52 = dma.done [#allocation6], 5120
    $region21: #{tpu_custom_call.1} parent=1 // pred_fallthru
      _
    // Predicated region
    $region22: #{tpu_custom_call.1} parent=1 // pred_check
      _
    $region23: #{tpu_custom_call.1} parent=1 // pred_check_branch
      %54 = sbr.rel (0) target = $region25
    $region24: #{tpu_custom_call.1} parent=1 // pred_region
      %55 = dma.done [#allocation6], 256
    $region25: #{tpu_custom_call.1} parent=1 // pred_fallthru
      _
    %v57 = vld [vmem:[#allocation2] sm:$0xff]
    %v58 = vld [vmem:[#allocation2 + $0x8] sm:$0xff]
    %v59 = vld [vmem:[#allocation2 + $0x10] sm:$0xff]
    %v60 = vld [vmem:[#allocation2 + $0x18] sm:$0xff]
    %v61 = vld [vmem:[#allocation2 + $0x20] sm:$0xff]
    %v62 = vld [vmem:[#allocation2 + $0x28] sm:$0xff]
    %v63 = vld [vmem:[#allocation2 + $0x30] sm:$0xff]
    %v64 = vld [vmem:[#allocation2 + $0x38] sm:$0xff]
    %v65 = vld [vmem:[#allocation2 + $0x40] sm:$0xff]
    %v66 = vld [vmem:[#allocation2 + $0x48] sm:$0xff]
    %v67 = vld [vmem:[#allocation2 + $0x50] sm:$0xff]
    %v68 = vld [vmem:[#allocation2 + $0x58] sm:$0xff]
    %v69 = vld [vmem:[#allocation2 + $0x60] sm:$0xff]
    %v70 = vld [vmem:[#allocation2 + $0x68] sm:$0xff]
    %v71 = vld [vmem:[#allocation2 + $0x70] sm:$0xff]
    %v72 = vld [vmem:[#allocation2 + $0x78] sm:$0xff]
    %v73 = vpack.c.bf16 %v58, %v57
    %v74 = vpack.c.bf16 %v60, %v59
    %v75 = vpack.c.bf16 %v62, %v61
    %v76 = vpack.c.bf16 %v64, %v63
    %v77 = vpack.c.bf16 %v66, %v65
    %v78 = vpack.c.bf16 %v68, %v67
    %v79 = vpack.c.bf16 %v70, %v69
    %v80 = vpack.c.bf16 %v72, %v71
    %v81 = vld [vmem:[#allocation5] sm:$0xf]
    %v82 = vld [vmem:[#allocation5 + $0x4] sm:$0xf]
    %v83 = vld [vmem:[#allocation5 + $0x8] sm:$0xf]
    %v84 = vld [vmem:[#allocation5 + $0xc] sm:$0xf]
    %v85 = vld [vmem:[#allocation5 + $0x10] sm:$0xf]
    %v86 = vld [vmem:[#allocation5 + $0x14] sm:$0xf]
    %v87 = vld [vmem:[#allocation5 + $0x18] sm:$0xf]
    %v88 = vld [vmem:[#allocation5 + $0x1c] sm:$0xf]
    %v89 = vld [vmem:[#allocation5 + $0x20] sm:$0xf]
    %v90 = vld [vmem:[#allocation5 + $0x24] sm:$0xf]
    %v91 = vld [vmem:[#allocation5 + $0x28] sm:$0xf]
    %v92 = vld [vmem:[#allocation5 + $0x2c] sm:$0xf]
    %v93 = vld [vmem:[#allocation5 + $0x30] sm:$0xf]
    %v94 = vld [vmem:[#allocation5 + $0x34] sm:$0xf]
    %v95 = vld [vmem:[#allocation5 + $0x38] sm:$0xf]
    %v96 = vld [vmem:[#allocation5 + $0x3c] sm:$0xf]
    %v97 = vld [vmem:[#allocation7] sm:$0x1]
    %v98 = vlaneseq
    %v99 = vshrl.u32 %v98, 7
    %v100 = vsub.s32 0, %v99
    %v101 = vrot.slane %v97, %v100
    %v118 = vunpack.c.l.b16 %v81
    %v119 = vunpack.c.l.b16 %v82
    %v120 = vunpack.c.l.b16 %v83
    %v121 = vunpack.c.l.b16 %v84
    %v122 = vunpack.c.l.b16 %v85
    %v123 = vunpack.c.l.b16 %v86
    %v124 = vunpack.c.l.b16 %v87
    %v125 = vunpack.c.l.b16 %v88
    %v126 = vunpack.c.l.b16 %v89
    %v127 = vunpack.c.l.b16 %v90
    %v128 = vunpack.c.l.b16 %v91
    %v129 = vunpack.c.l.b16 %v92
    %v130 = vunpack.c.l.b16 %v93
    %v131 = vunpack.c.l.b16 %v94
    %v132 = vunpack.c.l.b16 %v95
    %v133 = vunpack.c.l.b16 %v96
    %v134 = vpack.c.b16 %v119, %v118
    %v135 = vpack.c.b16 %v121, %v120
    %v136 = vpack.c.b16 %v123, %v122
    %v137 = vpack.c.b16 %v125, %v124
    %v138 = vpack.c.b16 %v127, %v126
    %v139 = vpack.c.b16 %v129, %v128
    %v140 = vpack.c.b16 %v131, %v130
    %v141 = vpack.c.b16 %v133, %v132
    %150 = vmatprep.subr.bf16.mxu0 0
    %151 = vmatpush1.bf16.msra.mxu0 %v134
    %152 = vmatprep.subr.bf16.mxu0 0
    %153 = vmatpush1.bf16.msra.mxu0 %v135
    %154 = vmatprep.subr.bf16.mxu0 0
    %155 = vmatpush1.bf16.msra.mxu0 %v136
    %156 = vmatprep.subr.bf16.mxu0 0
    %157 = vmatpush1.bf16.msra.mxu0 %v137
    %158 = vmatprep.subr.bf16.mxu0 0
    %159 = vmatpush1.bf16.msra.mxu0 %v138
    %160 = vmatprep.subr.bf16.mxu0 0
    %161 = vmatpush1.bf16.msra.mxu0 %v139
    %162 = vmatprep.subr.bf16.mxu0 0
    %163 = vmatpush1.bf16.msra.mxu0 %v140
    %164 = vmatprep.subr.bf16.mxu0 0
    %165 = vmatpush1.bf16.msra.mxu0 %v141
    %166 = vmatprep.subr.bf16.mxu0 0
    %167 = vmatpush1.bf16.msra.mxu0 0
    %168 = vmatprep.subr.bf16.mxu0 0
    %169 = vmatpush1.bf16.msra.mxu0 0
    %170 = vmatprep.subr.bf16.mxu0 0
    %171 = vmatpush1.bf16.msra.mxu0 0
    %172 = vmatprep.subr.bf16.mxu0 0
    %173 = vmatpush1.bf16.msra.mxu0 0
    %174 = vmatprep.subr.bf16.mxu0 0
    %175 = vmatpush1.bf16.msra.mxu0 0
    %176 = vmatprep.subr.bf16.mxu0 0
    %177 = vmatpush1.bf16.msra.mxu0 0
    %178 = vmatprep.subr.bf16.mxu0 0
    %179 = vmatpush1.bf16.msra.mxu0 0
    %180 = vmatprep.subr.bf16.mxu0 0
    %181 = vmatpush1.bf16.msra.mxu0 0
    %182 = vmatprep.mubr.bf16.mxu0 0
    %183 = vmatmul.mubr.bf16.gmra.mrb[0].mxu0 %v73
    %v184 = vpop.f32.mrb[0].mxu0
    %v185 = vadd.f32 %v101, %v184
    %v186 = vpop.f32.mrb[0].mxu0
    %v187 = vpop.f32.mrb[0].mxu0
    %v188 = vadd.f32 %v101, %v187
    %v189 = vpop.f32.mrb[0].mxu0
    %190 = vmatprep.mubr.bf16.mxu0 0
    %191 = vmatmul.mubr.bf16.gmra.mrb[0].mxu0 %v74
    %v192 = vpop.f32.mrb[0].mxu0
    %v193 = vadd.f32 %v101, %v192
    %v194 = vpop.f32.mrb[0].mxu0
    %v195 = vpop.f32.mrb[0].mxu0
    %v196 = vadd.f32 %v101, %v195
    %v197 = vpop.f32.mrb[0].mxu0
    %198 = vmatprep.mubr.bf16.mxu0 0
    %199 = vmatmul.mubr.bf16.gmra.mrb[0].mxu0 %v75
    %v200 = vpop.f32.mrb[0].mxu0
    %v201 = vadd.f32 %v101, %v200
    %v202 = vpop.f32.mrb[0].mxu0
    %v203 = vpop.f32.mrb[0].mxu0
    %v204 = vadd.f32 %v101, %v203
    %v205 = vpop.f32.mrb[0].mxu0
    %206 = vmatprep.mubr.bf16.mxu0 0
    %207 = vmatmul.mubr.bf16.gmra.mrb[0].mxu0 %v76
    %v208 = vpop.f32.mrb[0].mxu0
    %v209 = vadd.f32 %v101, %v208
    %v210 = vpop.f32.mrb[0].mxu0
    %v211 = vpop.f32.mrb[0].mxu0
    %v212 = vadd.f32 %v101, %v211
    %v213 = vpop.f32.mrb[0].mxu0
    %214 = vmatprep.mubr.bf16.mxu0 0
    %215 = vmatmul.mubr.bf16.gmra.mrb[0].mxu0 %v77
    %v216 = vpop.f32.mrb[0].mxu0
    %v217 = vadd.f32 %v101, %v216
    %v218 = vpop.f32.mrb[0].mxu0
    %v219 = vpop.f32.mrb[0].mxu0
    %v220 = vadd.f32 %v101, %v219
    %v221 = vpop.f32.mrb[0].mxu0
    %222 = vmatprep.mubr.bf16.mxu0 0
    %223 = vmatmul.mubr.bf16.gmra.mrb[0].mxu0 %v78
    %v224 = vpop.f32.mrb[0].mxu0
    %v225 = vadd.f32 %v101, %v224
    %v226 = vpop.f32.mrb[0].mxu0
    %v227 = vpop.f32.mrb[0].mxu0
    %v228 = vadd.f32 %v101, %v227
    %v229 = vpop.f32.mrb[0].mxu0
    %230 = vmatprep.mubr.bf16.mxu0 0
    %231 = vmatmul.mubr.bf16.gmra.mrb[0].mxu0 %v79
    %v232 = vpop.f32.mrb[0].mxu0
    %v233 = vadd.f32 %v101, %v232
    %v234 = vpop.f32.mrb[0].mxu0
    %v235 = vpop.f32.mrb[0].mxu0
    %v236 = vadd.f32 %v101, %v235
    %v237 = vpop.f32.mrb[0].mxu0
    %238 = vmatprep.mubr.bf16.mxu0 0
    %239 = vmatmul.mubr.bf16.gmra.mrb[0].mxu0 %v80
    %v240 = vpop.f32.mrb[0].mxu0
    %v241 = vadd.f32 %v101, %v240
    %v242 = vpop.f32.mrb[0].mxu0
    %v243 = vpop.f32.mrb[0].mxu0
    %v244 = vadd.f32 %v101, %v243
    %v245 = vpop.f32.mrb[0].mxu0
    %246 = vdwg.mxu0
    %v247 = vadd.f32 %v185, %v188
    %v248 = vadd.f32 %v247, %v193
    %v249 = vadd.f32 %v248, %v196
    %v250 = vadd.f32 %v249, %v201
    %v251 = vadd.f32 %v250, %v204
    %v252 = vadd.f32 %v251, %v209
    %v253 = vadd.f32 %v252, %v212
    %v254 = vadd.f32 %v253, %v217
    %v255 = vadd.f32 %v254, %v220
    %v256 = vadd.f32 %v255, %v225
    %v257 = vadd.f32 %v256, %v228
    %v258 = vadd.f32 %v257, %v233
    %v259 = vadd.f32 %v258, %v236
    %v260 = vadd.f32 %v259, %v241
    %v261 = vadd.f32 %v260, %v244
    %v262 = vrot.slane %v261, 4
    %v263 = vadd.f32 %v261, %v262
    %v264 = vrot.slane %v263, 2
    %v265 = vadd.f32 %v263, %v264
    %v266 = vrot.slane %v265, 1
    %v267 = vadd.f32 %v265, %v266
    %v268 = vrcp.pop 128.0
    %v269 = vmul.f32 %v267, %v268
    %v270 = vsub.f32 %v185, %v269
    %v271 = vsub.f32 %v188, %v269
    %v272 = vsub.f32 %v193, %v269
    %v273 = vsub.f32 %v196, %v269
    %v274 = vsub.f32 %v201, %v269
    %v275 = vsub.f32 %v204, %v269
    %v276 = vsub.f32 %v209, %v269
    %v277 = vsub.f32 %v212, %v269
    %v278 = vsub.f32 %v217, %v269
    %v279 = vsub.f32 %v220, %v269
    %v280 = vsub.f32 %v225, %v269
    %v281 = vsub.f32 %v228, %v269
    %v282 = vsub.f32 %v233, %v269
    %v283 = vsub.f32 %v236, %v269
    %v284 = vsub.f32 %v241, %v269
    %v285 = vsub.f32 %v244, %v269
    %v286 = vmul.f32 %v270, %v270
    %v287 = vmul.f32 %v271, %v271
    %v288 = vmul.f32 %v272, %v272
    %v289 = vmul.f32 %v273, %v273
    %v290 = vmul.f32 %v274, %v274
    %v291 = vmul.f32 %v275, %v275
    %v292 = vmul.f32 %v276, %v276
    %v293 = vmul.f32 %v277, %v277
    %v294 = vmul.f32 %v278, %v278
    %v295 = vmul.f32 %v279, %v279
    %v296 = vmul.f32 %v280, %v280
    %v297 = vmul.f32 %v281, %v281
    %v298 = vmul.f32 %v282, %v282
    %v299 = vmul.f32 %v283, %v283
    %v300 = vmul.f32 %v284, %v284
    %v301 = vmul.f32 %v285, %v285
    %v302 = vadd.f32 %v286, %v287
    %v303 = vadd.f32 %v302, %v288
    %v304 = vadd.f32 %v303, %v289
    %v305 = vadd.f32 %v304, %v290
    %v306 = vadd.f32 %v305, %v291
    %v307 = vadd.f32 %v306, %v292
    %v308 = vadd.f32 %v307, %v293
    %v309 = vadd.f32 %v308, %v294
    %v310 = vadd.f32 %v309, %v295
    %v311 = vadd.f32 %v310, %v296
    %v312 = vadd.f32 %v311, %v297
    %v313 = vadd.f32 %v312, %v298
    %v314 = vadd.f32 %v313, %v299
    %v315 = vadd.f32 %v314, %v300
    %v316 = vadd.f32 %v315, %v301
    %v317 = vrot.slane %v316, 4
    %v318 = vadd.f32 %v316, %v317
    %v319 = vrot.slane %v318, 2
    %v320 = vadd.f32 %v318, %v319
    %v321 = vrot.slane %v320, 1
    %v322 = vadd.f32 %v320, %v321
    %v323 = vmul.f32 %v322, %v268
    %v324 = vld [vmem:[#allocation7 + $0x5] sm:$0x1]
    %v325 = vadd.f32 %v323, 1e-05
    %v326 = vrsqrt.pop %v325
    %v327 = vmul.f32 %v324, %v326
    %v328 = vld [vmem:[#allocation7 + $0x9] sm:$0x1]
    %v329 = vmul.f32 %v269, %v327
    %v330 = vsub.f32 %v328, %v329
    %v331 = vlaneseq
    %v332 = vshrl.u32 %v331, 7
    %v333 = vsub.s32 0, %v332
    %v334 = vrot.slane %v327, %v333
    %v335 = vmul.f32 %v185, %v334
    %v336 = vmul.f32 %v188, %v334
    %v337 = vmul.f32 %v193, %v334
    %v338 = vmul.f32 %v196, %v334
    %v339 = vmul.f32 %v201, %v334
    %v340 = vmul.f32 %v204, %v334
    %v341 = vmul.f32 %v209, %v334
    %v342 = vmul.f32 %v212, %v334
    %v343 = vmul.f32 %v217, %v334
    %v344 = vmul.f32 %v220, %v334
    %v345 = vmul.f32 %v225, %v334
    %v346 = vmul.f32 %v228, %v334
    %v347 = vmul.f32 %v233, %v334
    %v348 = vmul.f32 %v236, %v334
    %v349 = vmul.f32 %v241, %v334
    %v350 = vmul.f32 %v244, %v334
    %v351 = vlaneseq
    %v352 = vshrl.u32 %v351, 7
    %v353 = vsub.s32 0, %v352
    %v354 = vrot.slane %v330, %v353
    %v355 = vadd.f32 %v335, %v354
    %v356 = vadd.f32 %v336, %v354
    %v357 = vadd.f32 %v337, %v354
    %v358 = vadd.f32 %v338, %v354
    %v359 = vadd.f32 %v339, %v354
    %v360 = vadd.f32 %v340, %v354
    %v361 = vadd.f32 %v341, %v354
    %v362 = vadd.f32 %v342, %v354
    %v363 = vadd.f32 %v343, %v354
    %v364 = vadd.f32 %v344, %v354
    %v365 = vadd.f32 %v345, %v354
    %v366 = vadd.f32 %v346, %v354
    %v367 = vadd.f32 %v347, %v354
    %v368 = vadd.f32 %v348, %v354
    %v369 = vadd.f32 %v349, %v354
    %v370 = vadd.f32 %v350, %v354
    %v371 = vsub.f32 0.0, %v355
    %v372 = vsub.f32 0.0, %v356
    %v373 = vsub.f32 0.0, %v357
    %v374 = vsub.f32 0.0, %v358
    %v375 = vsub.f32 0.0, %v359
    %v376 = vsub.f32 0.0, %v360
    %v377 = vsub.f32 0.0, %v361
    %v378 = vsub.f32 0.0, %v362
    %v379 = vsub.f32 0.0, %v363
    %v380 = vsub.f32 0.0, %v364
    %v381 = vsub.f32 0.0, %v365
    %v382 = vsub.f32 0.0, %v366
    %v383 = vsub.f32 0.0, %v367
    %v384 = vsub.f32 0.0, %v368
    %v385 = vsub.f32 0.0, %v369
    %v386 = vsub.f32 0.0, %v370
    %v387 = vmul.f32 %v371, 1.442695
    %v388 = vpow.pop %v387
    %v389 = vmul.f32 %v372, 1.442695
    %v390 = vpow.pop %v389
    %v391 = vmul.f32 %v373, 1.442695
    %v392 = vpow.pop %v391
    %v393 = vmul.f32 %v374, 1.442695
    %v394 = vpow.pop %v393
    %v395 = vmul.f32 %v375, 1.442695
    %v396 = vpow.pop %v395
    %v397 = vmul.f32 %v376, 1.442695
    %v398 = vpow.pop %v397
    %v399 = vmul.f32 %v377, 1.442695
    %v400 = vpow.pop %v399
    %v401 = vmul.f32 %v378, 1.442695
    %v402 = vpow.pop %v401
    %v403 = vmul.f32 %v379, 1.442695
    %v404 = vpow.pop %v403
    %v405 = vmul.f32 %v380, 1.442695
    %v406 = vpow.pop %v405
    %v407 = vmul.f32 %v381, 1.442695
    %v408 = vpow.pop %v407
    %v409 = vmul.f32 %v382, 1.442695
    %v410 = vpow.pop %v409
    %v411 = vmul.f32 %v383, 1.442695
    %v412 = vpow.pop %v411
    %v413 = vmul.f32 %v384, 1.442695
    %v414 = vpow.pop %v413
    %v415 = vmul.f32 %v385, 1.442695
    %v416 = vpow.pop %v415
    %v417 = vmul.f32 %v386, 1.442695
    %v418 = vpow.pop %v417
    %v419 = vadd.f32 %v388, 1.0
    %v420 = vadd.f32 %v390, 1.0
    %v421 = vadd.f32 %v392, 1.0
    %v422 = vadd.f32 %v394, 1.0
    %v423 = vadd.f32 %v396, 1.0
    %v424 = vadd.f32 %v398, 1.0
    %v425 = vadd.f32 %v400, 1.0
    %v426 = vadd.f32 %v402, 1.0
    %v427 = vadd.f32 %v404, 1.0
    %v428 = vadd.f32 %v406, 1.0
    %v429 = vadd.f32 %v408, 1.0
    %v430 = vadd.f32 %v410, 1.0
    %v431 = vadd.f32 %v412, 1.0
    %v432 = vadd.f32 %v414, 1.0
    %v433 = vadd.f32 %v416, 1.0
    %v434 = vadd.f32 %v418, 1.0
    %v435 = vrcp.pop %v419
    %v436 = vmul.f32 1.0, %v435
    %v437 = vrcp.pop %v420
    %v438 = vmul.f32 1.0, %v437
    %v439 = vrcp.pop %v421
    %v440 = vmul.f32 1.0, %v439
    %v441 = vrcp.pop %v422
    %v442 = vmul.f32 1.0, %v441
    %v443 = vrcp.pop %v423
    %v444 = vmul.f32 1.0, %v443
    %v445 = vrcp.pop %v424
    %v446 = vmul.f32 1.0, %v445
    %v447 = vrcp.pop %v425
    %v448 = vmul.f32 1.0, %v447
    %v449 = vrcp.pop %v426
    %v450 = vmul.f32 1.0, %v449
    %v451 = vrcp.pop %v427
    %v452 = vmul.f32 1.0, %v451
    %v453 = vrcp.pop %v428
    %v454 = vmul.f32 1.0, %v453
    %v455 = vrcp.pop %v429
    %v456 = vmul.f32 1.0, %v455
    %v457 = vrcp.pop %v430
    %v458 = vmul.f32 1.0, %v457
    %v459 = vrcp.pop %v431
    %v460 = vmul.f32 1.0, %v459
    %v461 = vrcp.pop %v432
    %v462 = vmul.f32 1.0, %v461
    %v463 = vrcp.pop %v433
    %v464 = vmul.f32 1.0, %v463
    %v465 = vrcp.pop %v434
    %v466 = vmul.f32 1.0, %v465
    %v467 = vmul.f32 %v355, %v436
    %v468 = vmul.f32 %v356, %v438
    %v469 = vmul.f32 %v357, %v440
    %v470 = vmul.f32 %v358, %v442
    %v471 = vmul.f32 %v359, %v444
    %v472 = vmul.f32 %v360, %v446
    %v473 = vmul.f32 %v361, %v448
    %v474 = vmul.f32 %v362, %v450
    %v475 = vmul.f32 %v363, %v452
    %v476 = vmul.f32 %v364, %v454
    %v477 = vmul.f32 %v365, %v456
    %v478 = vmul.f32 %v366, %v458
    %v479 = vmul.f32 %v367, %v460
    %v480 = vmul.f32 %v368, %v462
    %v481 = vmul.f32 %v369, %v464
    %v482 = vmul.f32 %v370, %v466
    %v483 = vpack.c.bf16 %v468, %v467
    %v484 = vpack.c.bf16 %v470, %v469
    %v485 = vpack.c.bf16 %v472, %v471
    %v486 = vpack.c.bf16 %v474, %v473
    %v487 = vpack.c.bf16 %v476, %v475
    %v488 = vpack.c.bf16 %v478, %v477
    %v489 = vpack.c.bf16 %v480, %v479
    %v490 = vpack.c.bf16 %v482, %v481
    %s491 = scalar_lea.vmem [#allocation5], 64
    %v492 = vld [vmem:[%s491] sm:$0xf]
    %v493 = vld [vmem:[%s491 + $0x4] sm:$0xf]
    %v494 = vld [vmem:[%s491 + $0x8] sm:$0xf]
    %v495 = vld [vmem:[%s491 + $0xc] sm:$0xf]
    %v496 = vld [vmem:[%s491 + $0x10] sm:$0xf]
    %v497 = vld [vmem:[%s491 + $0x14] sm:$0xf]
    %v498 = vld [vmem:[%s491 + $0x18] sm:$0xf]
    %v499 = vld [vmem:[%s491 + $0x1c] sm:$0xf]
    %v500 = vld [vmem:[%s491 + $0x20] sm:$0xf]
    %v501 = vld [vmem:[%s491 + $0x24] sm:$0xf]
    %v502 = vld [vmem:[%s491 + $0x28] sm:$0xf]
    %v503 = vld [vmem:[%s491 + $0x2c] sm:$0xf]
    %v504 = vld [vmem:[%s491 + $0x30] sm:$0xf]
    %v505 = vld [vmem:[%s491 + $0x34] sm:$0xf]
    %v506 = vld [vmem:[%s491 + $0x38] sm:$0xf]
    %v507 = vld [vmem:[%s491 + $0x3c] sm:$0xf]
    %v508 = vld [vmem:[#allocation7 + $0x1] sm:$0x1]
    %v509 = vlaneseq
    %v510 = vshrl.u32 %v509, 7
    %v511 = vsub.s32 0, %v510
    %v512 = vrot.slane %v508, %v511
    %v529 = vunpack.c.l.b16 %v492
    %v530 = vunpack.c.l.b16 %v493
    %v531 = vunpack.c.l.b16 %v494
    %v532 = vunpack.c.l.b16 %v495
    %v533 = vunpack.c.l.b16 %v496
    %v534 = vunpack.c.l.b16 %v497
    %v535 = vunpack.c.l.b16 %v498
    %v536 = vunpack.c.l.b16 %v499
    %v537 = vunpack.c.l.b16 %v500
    %v538 = vunpack.c.l.b16 %v501
    %v539 = vunpack.c.l.b16 %v502
    %v540 = vunpack.c.l.b16 %v503
    %v541 = vunpack.c.l.b16 %v504
    %v542 = vunpack.c.l.b16 %v505
    %v543 = vunpack.c.l.b16 %v506
    %v544 = vunpack.c.l.b16 %v507
    %v545 = vpack.c.b16 %v530, %v529
    %v546 = vpack.c.b16 %v532, %v531
    %v547 = vpack.c.b16 %v534, %v533
    %v548 = vpack.c.b16 %v536, %v535
    %v549 = vpack.c.b16 %v538, %v537
    %v550 = vpack.c.b16 %v540, %v539
    %v551 = vpack.c.b16 %v542, %v541
    %v552 = vpack.c.b16 %v544, %v543
    %561 = vmatprep.subr.bf16.mxu0 0
    %562 = vmatpush1.bf16.msra.mxu0 %v545
    %563 = vmatprep.subr.bf16.mxu0 0
    %564 = vmatpush1.bf16.msra.mxu0 %v546
    %565 = vmatprep.subr.bf16.mxu0 0
    %566 = vmatpush1.bf16.msra.mxu0 %v547
    %567 = vmatprep.subr.bf16.mxu0 0
    %568 = vmatpush1.bf16.msra.mxu0 %v548
    %569 = vmatprep.subr.bf16.mxu0 0
    %570 = vmatpush1.bf16.msra.mxu0 %v549
    %571 = vmatprep.subr.bf16.mxu0 0
    %572 = vmatpush1.bf16.msra.mxu0 %v550
    %573 = vmatprep.subr.bf16.mxu0 0
    %574 = vmatpush1.bf16.msra.mxu0 %v551
    %575 = vmatprep.subr.bf16.mxu0 0
    %576 = vmatpush1.bf16.msra.mxu0 %v552
    %577 = vmatprep.subr.bf16.mxu0 0
    %578 = vmatpush1.bf16.msra.mxu0 0
    %579 = vmatprep.subr.bf16.mxu0 0
    %580 = vmatpush1.bf16.msra.mxu0 0
    %581 = vmatprep.subr.bf16.mxu0 0
    %582 = vmatpush1.bf16.msra.mxu0 0
    %583 = vmatprep.subr.bf16.mxu0 0
    %584 = vmatpush1.bf16.msra.mxu0 0
    %585 = vmatprep.subr.bf16.mxu0 0
    %586 = vmatpush1.bf16.msra.mxu0 0
    %587 = vmatprep.subr.bf16.mxu0 0
    %588 = vmatpush1.bf16.msra.mxu0 0
    %589 = vmatprep.subr.bf16.mxu0 0
    %590 = vmatpush1.bf16.msra.mxu0 0
    %591 = vmatprep.subr.bf16.mxu0 0
    %592 = vmatpush1.bf16.msra.mxu0 0
    %593 = vmatprep.mubr.bf16.mxu0 0
    %594 = vmatmul.mubr.bf16.gmra.mrb[0].mxu0 %v483
    %v595 = vpop.f32.mrb[0].mxu0
    %v596 = vadd.f32 %v512, %v595
    %v597 = vpop.f32.mrb[0].mxu0
    %v598 = vpop.f32.mrb[0].mxu0
    %v599 = vadd.f32 %v512, %v598
    %v600 = vpop.f32.mrb[0].mxu0
    %601 = vmatprep.mubr.bf16.mxu0 0
    %602 = vmatmul.mubr.bf16.gmra.mrb[0].mxu0 %v484
    %v603 = vpop.f32.mrb[0].mxu0
    %v604 = vadd.f32 %v512, %v603
    %v605 = vpop.f32.mrb[0].mxu0
    %v606 = vpop.f32.mrb[0].mxu0
    %v607 = vadd.f32 %v512, %v606
    %v608 = vpop.f32.mrb[0].mxu0
    %609 = vmatprep.mubr.bf16.mxu0 0
    %610 = vmatmul.mubr.bf16.gmra.mrb[0].mxu0 %v485
    %v611 = vpop.f32.mrb[0].mxu0
    %v612 = vadd.f32 %v512, %v611
    %v613 = vpop.f32.mrb[0].mxu0
    %v614 = vpop.f32.mrb[0].mxu0
    %v615 = vadd.f32 %v512, %v614
    %v616 = vpop.f32.mrb[0].mxu0
    %617 = vmatprep.mubr.bf16.mxu0 0
    %618 = vmatmul.mubr.bf16.gmra.mrb[0].mxu0 %v486
    %v619 = vpop.f32.mrb[0].mxu0
    %v620 = vadd.f32 %v512, %v619
    %v621 = vpop.f32.mrb[0].mxu0
    %v622 = vpop.f32.mrb[0].mxu0
    %v623 = vadd.f32 %v512, %v622
    %v624 = vpop.f32.mrb[0].mxu0
    %625 = vmatprep.mubr.bf16.mxu0 0
    %626 = vmatmul.mubr.bf16.gmra.mrb[0].mxu0 %v487
    %v627 = vpop.f32.mrb[0].mxu0
    %v628 = vadd.f32 %v512, %v627
    %v629 = vpop.f32.mrb[0].mxu0
    %v630 = vpop.f32.mrb[0].mxu0
    %v631 = vadd.f32 %v512, %v630
    %v632 = vpop.f32.mrb[0].mxu0
    %633 = vmatprep.mubr.bf16.mxu0 0
    %634 = vmatmul.mubr.bf16.gmra.mrb[0].mxu0 %v488
    %v635 = vpop.f32.mrb[0].mxu0
    %v636 = vadd.f32 %v512, %v635
    %v637 = vpop.f32.mrb[0].mxu0
    %v638 = vpop.f32.mrb[0].mxu0
    %v639 = vadd.f32 %v512, %v638
    %v640 = vpop.f32.mrb[0].mxu0
    %641 = vmatprep.mubr.bf16.mxu0 0
    %642 = vmatmul.mubr.bf16.gmra.mrb[0].mxu0 %v489
    %v643 = vpop.f32.mrb[0].mxu0
    %v644 = vadd.f32 %v512, %v643
    %v645 = vpop.f32.mrb[0].mxu0
    %v646 = vpop.f32.mrb[0].mxu0
    %v647 = vadd.f32 %v512, %v646
    %v648 = vpop.f32.mrb[0].mxu0
    %649 = vmatprep.mubr.bf16.mxu0 0
    %650 = vmatmul.mubr.bf16.gmra.mrb[0].mxu0 %v490
    %v651 = vpop.f32.mrb[0].mxu0
    %v652 = vadd.f32 %v512, %v651
    %v653 = vpop.f32.mrb[0].mxu0
    %v654 = vpop.f32.mrb[0].mxu0
    %v655 = vadd.f32 %v512, %v654
    %v656 = vpop.f32.mrb[0].mxu0
    %657 = vdwg.mxu0
    %v658 = vadd.f32 %v596, %v599
    %v659 = vadd.f32 %v658, %v604
    %v660 = vadd.f32 %v659, %v607
    %v661 = vadd.f32 %v660, %v612
    %v662 = vadd.f32 %v661, %v615
    %v663 = vadd.f32 %v662, %v620
    %v664 = vadd.f32 %v663, %v623
    %v665 = vadd.f32 %v664, %v628
    %v666 = vadd.f32 %v665, %v631
    %v667 = vadd.f32 %v666, %v636
    %v668 = vadd.f32 %v667, %v639
    %v669 = vadd.f32 %v668, %v644
    %v670 = vadd.f32 %v669, %v647
    %v671 = vadd.f32 %v670, %v652
    %v672 = vadd.f32 %v671, %v655
    %v673 = vrot.slane %v672, 4
    %v674 = vadd.f32 %v672, %v673
    %v675 = vrot.slane %v674, 2
    %v676 = vadd.f32 %v674, %v675
    %v677 = vrot.slane %v676, 1
    %v678 = vadd.f32 %v676, %v677
    %v679 = vmul.f32 %v678, %v268
    %v680 = vsub.f32 %v596, %v679
    %v681 = vsub.f32 %v599, %v679
    %v682 = vsub.f32 %v604, %v679
    %v683 = vsub.f32 %v607, %v679
    %v684 = vsub.f32 %v612, %v679
    %v685 = vsub.f32 %v615, %v679
    %v686 = vsub.f32 %v620, %v679
    %v687 = vsub.f32 %v623, %v679
    %v688 = vsub.f32 %v628, %v679
    %v689 = vsub.f32 %v631, %v679
    %v690 = vsub.f32 %v636, %v679
    %v691 = vsub.f32 %v639, %v679
    %v692 = vsub.f32 %v644, %v679
    %v693 = vsub.f32 %v647, %v679
    %v694 = vsub.f32 %v652, %v679
    %v695 = vsub.f32 %v655, %v679
    %v696 = vmul.f32 %v680, %v680
    %v697 = vmul.f32 %v681, %v681
    %v698 = vmul.f32 %v682, %v682
    %v699 = vmul.f32 %v683, %v683
    %v700 = vmul.f32 %v684, %v684
    %v701 = vmul.f32 %v685, %v685
    %v702 = vmul.f32 %v686, %v686
    %v703 = vmul.f32 %v687, %v687
    %v704 = vmul.f32 %v688, %v688
    %v705 = vmul.f32 %v689, %v689
    %v706 = vmul.f32 %v690, %v690
    %v707 = vmul.f32 %v691, %v691
    %v708 = vmul.f32 %v692, %v692
    %v709 = vmul.f32 %v693, %v693
    %v710 = vmul.f32 %v694, %v694
    %v711 = vmul.f32 %v695, %v695
    %v712 = vadd.f32 %v696, %v697
    %v713 = vadd.f32 %v712, %v698
    %v714 = vadd.f32 %v713, %v699
    %v715 = vadd.f32 %v714, %v700
    %v716 = vadd.f32 %v715, %v701
    %v717 = vadd.f32 %v716, %v702
    %v718 = vadd.f32 %v717, %v703
    %v719 = vadd.f32 %v718, %v704
    %v720 = vadd.f32 %v719, %v705
    %v721 = vadd.f32 %v720, %v706
    %v722 = vadd.f32 %v721, %v707
    %v723 = vadd.f32 %v722, %v708
    %v724 = vadd.f32 %v723, %v709
    %v725 = vadd.f32 %v724, %v710
    %v726 = vadd.f32 %v725, %v711
    %v727 = vrot.slane %v726, 4
    %v728 = vadd.f32 %v726, %v727
    %v729 = vrot.slane %v728, 2
    %v730 = vadd.f32 %v728, %v729
    %v731 = vrot.slane %v730, 1
    %v732 = vadd.f32 %v730, %v731
    %v733 = vmul.f32 %v732, %v268
    %v734 = vld [vmem:[#allocation7 + $0x6] sm:$0x1]
    %v735 = vadd.f32 %v733, 1e-05
    %v736 = vrsqrt.pop %v735
    %v737 = vmul.f32 %v734, %v736
    %v738 = vld [vmem:[#allocation7 + $0xa] sm:$0x1]
    %v739 = vmul.f32 %v679, %v737
    %v740 = vsub.f32 %v738, %v739
    %v741 = vlaneseq
    %v742 = vshrl.u32 %v741, 7
    %v743 = vsub.s32 0, %v742
    %v744 = vrot.slane %v737, %v743
    %v745 = vmul.f32 %v596, %v744
    %v746 = vmul.f32 %v599, %v744
    %v747 = vmul.f32 %v604, %v744
    %v748 = vmul.f32 %v607, %v744
    %v749 = vmul.f32 %v612, %v744
    %v750 = vmul.f32 %v615, %v744
    %v751 = vmul.f32 %v620, %v744
    %v752 = vmul.f32 %v623, %v744
    %v753 = vmul.f32 %v628, %v744
    %v754 = vmul.f32 %v631, %v744
    %v755 = vmul.f32 %v636, %v744
    %v756 = vmul.f32 %v639, %v744
    %v757 = vmul.f32 %v644, %v744
    %v758 = vmul.f32 %v647, %v744
    %v759 = vmul.f32 %v652, %v744
    %v760 = vmul.f32 %v655, %v744
    %v761 = vlaneseq
    %v762 = vshrl.u32 %v761, 7
    %v763 = vsub.s32 0, %v762
    %v764 = vrot.slane %v740, %v763
    %v765 = vadd.f32 %v745, %v764
    %v766 = vadd.f32 %v746, %v764
    %v767 = vadd.f32 %v747, %v764
    %v768 = vadd.f32 %v748, %v764
    %v769 = vadd.f32 %v749, %v764
    %v770 = vadd.f32 %v750, %v764
    %v771 = vadd.f32 %v751, %v764
    %v772 = vadd.f32 %v752, %v764
    %v773 = vadd.f32 %v753, %v764
    %v774 = vadd.f32 %v754, %v764
    %v775 = vadd.f32 %v755, %v764
    %v776 = vadd.f32 %v756, %v764
    %v777 = vadd.f32 %v757, %v764
    %v778 = vadd.f32 %v758, %v764
    %v779 = vadd.f32 %v759, %v764
    %v780 = vadd.f32 %v760, %v764
    %v781 = vsub.f32 0.0, %v765
    %v782 = vsub.f32 0.0, %v766
    %v783 = vsub.f32 0.0, %v767
    %v784 = vsub.f32 0.0, %v768
    %v785 = vsub.f32 0.0, %v769
    %v786 = vsub.f32 0.0, %v770
    %v787 = vsub.f32 0.0, %v771
    %v788 = vsub.f32 0.0, %v772
    %v789 = vsub.f32 0.0, %v773
    %v790 = vsub.f32 0.0, %v774
    %v791 = vsub.f32 0.0, %v775
    %v792 = vsub.f32 0.0, %v776
    %v793 = vsub.f32 0.0, %v777
    %v794 = vsub.f32 0.0, %v778
    %v795 = vsub.f32 0.0, %v779
    %v796 = vsub.f32 0.0, %v780
    %v797 = vmul.f32 %v781, 1.442695
    %v798 = vpow.pop %v797
    %v799 = vmul.f32 %v782, 1.442695
    %v800 = vpow.pop %v799
    %v801 = vmul.f32 %v783, 1.442695
    %v802 = vpow.pop %v801
    %v803 = vmul.f32 %v784, 1.442695
    %v804 = vpow.pop %v803
    %v805 = vmul.f32 %v785, 1.442695
    %v806 = vpow.pop %v805
    %v807 = vmul.f32 %v786, 1.442695
    %v808 = vpow.pop %v807
    %v809 = vmul.f32 %v787, 1.442695
    %v810 = vpow.pop %v809
    %v811 = vmul.f32 %v788, 1.442695
    %v812 = vpow.pop %v811
    %v813 = vmul.f32 %v789, 1.442695
    %v814 = vpow.pop %v813
    %v815 = vmul.f32 %v790, 1.442695
    %v816 = vpow.pop %v815
    %v817 = vmul.f32 %v791, 1.442695
    %v818 = vpow.pop %v817
    %v819 = vmul.f32 %v792, 1.442695
    %v820 = vpow.pop %v819
    %v821 = vmul.f32 %v793, 1.442695
    %v822 = vpow.pop %v821
    %v823 = vmul.f32 %v794, 1.442695
    %v824 = vpow.pop %v823
    %v825 = vmul.f32 %v795, 1.442695
    %v826 = vpow.pop %v825
    %v827 = vmul.f32 %v796, 1.442695
    %v828 = vpow.pop %v827
    %v829 = vadd.f32 %v798, 1.0
    %v830 = vadd.f32 %v800, 1.0
    %v831 = vadd.f32 %v802, 1.0
    %v832 = vadd.f32 %v804, 1.0
    %v833 = vadd.f32 %v806, 1.0
    %v834 = vadd.f32 %v808, 1.0
    %v835 = vadd.f32 %v810, 1.0
    %v836 = vadd.f32 %v812, 1.0
    %v837 = vadd.f32 %v814, 1.0
    %v838 = vadd.f32 %v816, 1.0
    %v839 = vadd.f32 %v818, 1.0
    %v840 = vadd.f32 %v820, 1.0
    %v841 = vadd.f32 %v822, 1.0
    %v842 = vadd.f32 %v824, 1.0
    %v843 = vadd.f32 %v826, 1.0
    %v844 = vadd.f32 %v828, 1.0
    %v845 = vrcp.pop %v829
    %v846 = vmul.f32 1.0, %v845
    %v847 = vrcp.pop %v830
    %v848 = vmul.f32 1.0, %v847
    %v849 = vrcp.pop %v831
    %v850 = vmul.f32 1.0, %v849
    %v851 = vrcp.pop %v832
    %v852 = vmul.f32 1.0, %v851
    %v853 = vrcp.pop %v833
    %v854 = vmul.f32 1.0, %v853
    %v855 = vrcp.pop %v834
    %v856 = vmul.f32 1.0, %v855
    %v857 = vrcp.pop %v835
    %v858 = vmul.f32 1.0, %v857
    %v859 = vrcp.pop %v836
    %v860 = vmul.f32 1.0, %v859
    %v861 = vrcp.pop %v837
    %v862 = vmul.f32 1.0, %v861
    %v863 = vrcp.pop %v838
    %v864 = vmul.f32 1.0, %v863
    %v865 = vrcp.pop %v839
    %v866 = vmul.f32 1.0, %v865
    %v867 = vrcp.pop %v840
    %v868 = vmul.f32 1.0, %v867
    %v869 = vrcp.pop %v841
    %v870 = vmul.f32 1.0, %v869
    %v871 = vrcp.pop %v842
    %v872 = vmul.f32 1.0, %v871
    %v873 = vrcp.pop %v843
    %v874 = vmul.f32 1.0, %v873
    %v875 = vrcp.pop %v844
    %v876 = vmul.f32 1.0, %v875
    %v877 = vmul.f32 %v765, %v846
    %v878 = vmul.f32 %v766, %v848
    %v879 = vmul.f32 %v767, %v850
    %v880 = vmul.f32 %v768, %v852
    %v881 = vmul.f32 %v769, %v854
    %v882 = vmul.f32 %v770, %v856
    %v883 = vmul.f32 %v771, %v858
    %v884 = vmul.f32 %v772, %v860
    %v885 = vmul.f32 %v773, %v862
    %v886 = vmul.f32 %v774, %v864
    %v887 = vmul.f32 %v775, %v866
    %v888 = vmul.f32 %v776, %v868
    %v889 = vmul.f32 %v777, %v870
    %v890 = vmul.f32 %v778, %v872
    %v891 = vmul.f32 %v779, %v874
    %v892 = vmul.f32 %v780, %v876
    %v893 = vpack.c.bf16 %v878, %v877
    %v894 = vpack.c.bf16 %v880, %v879
    %v895 = vpack.c.bf16 %v882, %v881
    %v896 = vpack.c.bf16 %v884, %v883
    %v897 = vpack.c.bf16 %v886, %v885
    %v898 = vpack.c.bf16 %v888, %v887
    %v899 = vpack.c.bf16 %v890, %v889
    %v900 = vpack.c.bf16 %v892, %v891
    %s901 = scalar_lea.vmem [#allocation5], 128
    %v902 = vld [vmem:[%s901] sm:$0xf]
    %v903 = vld [vmem:[%s901 + $0x4] sm:$0xf]
    %v904 = vld [vmem:[%s901 + $0x8] sm:$0xf]
    %v905 = vld [vmem:[%s901 + $0xc] sm:$0xf]
    %v906 = vld [vmem:[%s901 + $0x10] sm:$0xf]
    %v907 = vld [vmem:[%s901 + $0x14] sm:$0xf]
    %v908 = vld [vmem:[%s901 + $0x18] sm:$0xf]
    %v909 = vld [vmem:[%s901 + $0x1c] sm:$0xf]
    %v910 = vld [vmem:[%s901 + $0x20] sm:$0xf]
    %v911 = vld [vmem:[%s901 + $0x24] sm:$0xf]
    %v912 = vld [vmem:[%s901 + $0x28] sm:$0xf]
    %v913 = vld [vmem:[%s901 + $0x2c] sm:$0xf]
    %v914 = vld [vmem:[%s901 + $0x30] sm:$0xf]
    %v915 = vld [vmem:[%s901 + $0x34] sm:$0xf]
    %v916 = vld [vmem:[%s901 + $0x38] sm:$0xf]
    %v917 = vld [vmem:[%s901 + $0x3c] sm:$0xf]
    %v918 = vld [vmem:[#allocation7 + $0x2] sm:$0x1]
    %v919 = vlaneseq
    %v920 = vshrl.u32 %v919, 7
    %v921 = vsub.s32 0, %v920
    %v922 = vrot.slane %v918, %v921
    %v939 = vunpack.c.l.b16 %v902
    %v940 = vunpack.c.l.b16 %v903
    %v941 = vunpack.c.l.b16 %v904
    %v942 = vunpack.c.l.b16 %v905
    %v943 = vunpack.c.l.b16 %v906
    %v944 = vunpack.c.l.b16 %v907
    %v945 = vunpack.c.l.b16 %v908
    %v946 = vunpack.c.l.b16 %v909
    %v947 = vunpack.c.l.b16 %v910
    %v948 = vunpack.c.l.b16 %v911
    %v949 = vunpack.c.l.b16 %v912
    %v950 = vunpack.c.l.b16 %v913
    %v951 = vunpack.c.l.b16 %v914
    %v952 = vunpack.c.l.b16 %v915
    %v953 = vunpack.c.l.b16 %v916
    %v954 = vunpack.c.l.b16 %v917
    %v955 = vpack.c.b16 %v940, %v939
    %v956 = vpack.c.b16 %v942, %v941
    %v957 = vpack.c.b16 %v944, %v943
    %v958 = vpack.c.b16 %v946, %v945
    %v959 = vpack.c.b16 %v948, %v947
    %v960 = vpack.c.b16 %v950, %v949
    %v961 = vpack.c.b16 %v952, %v951
    %v962 = vpack.c.b16 %v954, %v953
    %971 = vmatprep.subr.bf16.mxu0 0
    %972 = vmatpush1.bf16.msra.mxu0 %v955
    %973 = vmatprep.subr.bf16.mxu0 0
    %974 = vmatpush1.bf16.msra.mxu0 %v956
    %975 = vmatprep.subr.bf16.mxu0 0
    %976 = vmatpush1.bf16.msra.mxu0 %v957
    %977 = vmatprep.subr.bf16.mxu0 0
    %978 = vmatpush1.bf16.msra.mxu0 %v958
    %979 = vmatprep.subr.bf16.mxu0 0
    %980 = vmatpush1.bf16.msra.mxu0 %v959
    %981 = vmatprep.subr.bf16.mxu0 0
    %982 = vmatpush1.bf16.msra.mxu0 %v960
    %983 = vmatprep.subr.bf16.mxu0 0
    %984 = vmatpush1.bf16.msra.mxu0 %v961
    %985 = vmatprep.subr.bf16.mxu0 0
    %986 = vmatpush1.bf16.msra.mxu0 %v962
    %987 = vmatprep.subr.bf16.mxu0 0
    %988 = vmatpush1.bf16.msra.mxu0 0
    %989 = vmatprep.subr.bf16.mxu0 0
    %990 = vmatpush1.bf16.msra.mxu0 0
    %991 = vmatprep.subr.bf16.mxu0 0
    %992 = vmatpush1.bf16.msra.mxu0 0
    %993 = vmatprep.subr.bf16.mxu0 0
    %994 = vmatpush1.bf16.msra.mxu0 0
    %995 = vmatprep.subr.bf16.mxu0 0
    %996 = vmatpush1.bf16.msra.mxu0 0
    %997 = vmatprep.subr.bf16.mxu0 0
    %998 = vmatpush1.bf16.msra.mxu0 0
    %999 = vmatprep.subr.bf16.mxu0 0
    %1000 = vmatpush1.bf16.msra.mxu0 0
    %1001 = vmatprep.subr.bf16.mxu0 0
    %1002 = vmatpush1.bf16.msra.mxu0 0
    %1003 = vmatprep.mubr.bf16.mxu0 0
    %1004 = vmatmul.mubr.bf16.gmra.mrb[0].mxu0 %v893
    %v1005 = vpop.f32.mrb[0].mxu0
    %v1006 = vadd.f32 %v922, %v1005
    %v1007 = vpop.f32.mrb[0].mxu0
    %v1008 = vpop.f32.mrb[0].mxu0
    %v1009 = vadd.f32 %v922, %v1008
    %v1010 = vpop.f32.mrb[0].mxu0
    %1011 = vmatprep.mubr.bf16.mxu0 0
    %1012 = vmatmul.mubr.bf16.gmra.mrb[0].mxu0 %v894
    %v1013 = vpop.f32.mrb[0].mxu0
    %v1014 = vadd.f32 %v922, %v1013
    %v1015 = vpop.f32.mrb[0].mxu0
    %v1016 = vpop.f32.mrb[0].mxu0
    %v1017 = vadd.f32 %v922, %v1016
    %v1018 = vpop.f32.mrb[0].mxu0
    %1019 = vmatprep.mubr.bf16.mxu0 0
    %1020 = vmatmul.mubr.bf16.gmra.mrb[0].mxu0 %v895
    %v1021 = vpop.f32.mrb[0].mxu0
    %v1022 = vadd.f32 %v922, %v1021
    %v1023 = vpop.f32.mrb[0].mxu0
    %v1024 = vpop.f32.mrb[0].mxu0
    %v1025 = vadd.f32 %v922, %v1024
    %v1026 = vpop.f32.mrb[0].mxu0
    %1027 = vmatprep.mubr.bf16.mxu0 0
    %1028 = vmatmul.mubr.bf16.gmra.mrb[0].mxu0 %v896
    %v1029 = vpop.f32.mrb[0].mxu0
    %v1030 = vadd.f32 %v922, %v1029
    %v1031 = vpop.f32.mrb[0].mxu0
    %v1032 = vpop.f32.mrb[0].mxu0
    %v1033 = vadd.f32 %v922, %v1032
    %v1034 = vpop.f32.mrb[0].mxu0
    %1035 = vmatprep.mubr.bf16.mxu0 0
    %1036 = vmatmul.mubr.bf16.gmra.mrb[0].mxu0 %v897
    %v1037 = vpop.f32.mrb[0].mxu0
    %v1038 = vadd.f32 %v922, %v1037
    %v1039 = vpop.f32.mrb[0].mxu0
    %v1040 = vpop.f32.mrb[0].mxu0
    %v1041 = vadd.f32 %v922, %v1040
    %v1042 = vpop.f32.mrb[0].mxu0
    %1043 = vmatprep.mubr.bf16.mxu0 0
    %1044 = vmatmul.mubr.bf16.gmra.mrb[0].mxu0 %v898
    %v1045 = vpop.f32.mrb[0].mxu0
    %v1046 = vadd.f32 %v922, %v1045
    %v1047 = vpop.f32.mrb[0].mxu0
    %v1048 = vpop.f32.mrb[0].mxu0
    %v1049 = vadd.f32 %v922, %v1048
    %v1050 = vpop.f32.mrb[0].mxu0
    %1051 = vmatprep.mubr.bf16.mxu0 0
    %1052 = vmatmul.mubr.bf16.gmra.mrb[0].mxu0 %v899
    %v1053 = vpop.f32.mrb[0].mxu0
    %v1054 = vadd.f32 %v922, %v1053
    %v1055 = vpop.f32.mrb[0].mxu0
    %v1056 = vpop.f32.mrb[0].mxu0
    %v1057 = vadd.f32 %v922, %v1056
    %v1058 = vpop.f32.mrb[0].mxu0
    %1059 = vmatprep.mubr.bf16.mxu0 0
    %1060 = vmatmul.mubr.bf16.gmra.mrb[0].mxu0 %v900
    %v1061 = vpop.f32.mrb[0].mxu0
    %v1062 = vadd.f32 %v922, %v1061
    %v1063 = vpop.f32.mrb[0].mxu0
    %v1064 = vpop.f32.mrb[0].mxu0
    %v1065 = vadd.f32 %v922, %v1064
    %v1066 = vpop.f32.mrb[0].mxu0
    %1067 = vdwg.mxu0
    %v1068 = vadd.f32 %v1006, %v1009
    %v1069 = vadd.f32 %v1068, %v1014
    %v1070 = vadd.f32 %v1069, %v1017
    %v1071 = vadd.f32 %v1070, %v1022
    %v1072 = vadd.f32 %v1071, %v1025
    %v1073 = vadd.f32 %v1072, %v1030
    %v1074 = vadd.f32 %v1073, %v1033
    %v1075 = vadd.f32 %v1074, %v1038
    %v1076 = vadd.f32 %v1075, %v1041
    %v1077 = vadd.f32 %v1076, %v1046
    %v1078 = vadd.f32 %v1077, %v1049
    %v1079 = vadd.f32 %v1078, %v1054
    %v1080 = vadd.f32 %v1079, %v1057
    %v1081 = vadd.f32 %v1080, %v1062
    %v1082 = vadd.f32 %v1081, %v1065
    %v1083 = vrot.slane %v1082, 4
    %v1084 = vadd.f32 %v1082, %v1083
    %v1085 = vrot.slane %v1084, 2
    %v1086 = vadd.f32 %v1084, %v1085
    %v1087 = vrot.slane %v1086, 1
    %v1088 = vadd.f32 %v1086, %v1087
    %v1089 = vmul.f32 %v1088, %v268
    %v1090 = vsub.f32 %v1006, %v1089
    %v1091 = vsub.f32 %v1009, %v1089
    %v1092 = vsub.f32 %v1014, %v1089
    %v1093 = vsub.f32 %v1017, %v1089
    %v1094 = vsub.f32 %v1022, %v1089
    %v1095 = vsub.f32 %v1025, %v1089
    %v1096 = vsub.f32 %v1030, %v1089
    %v1097 = vsub.f32 %v1033, %v1089
    %v1098 = vsub.f32 %v1038, %v1089
    %v1099 = vsub.f32 %v1041, %v1089
    %v1100 = vsub.f32 %v1046, %v1089
    %v1101 = vsub.f32 %v1049, %v1089
    %v1102 = vsub.f32 %v1054, %v1089
    %v1103 = vsub.f32 %v1057, %v1089
    %v1104 = vsub.f32 %v1062, %v1089
    %v1105 = vsub.f32 %v1065, %v1089
    %v1106 = vmul.f32 %v1090, %v1090
    %v1107 = vmul.f32 %v1091, %v1091
    %v1108 = vmul.f32 %v1092, %v1092
    %v1109 = vmul.f32 %v1093, %v1093
    %v1110 = vmul.f32 %v1094, %v1094
    %v1111 = vmul.f32 %v1095, %v1095
    %v1112 = vmul.f32 %v1096, %v1096
    %v1113 = vmul.f32 %v1097, %v1097
    %v1114 = vmul.f32 %v1098, %v1098
    %v1115 = vmul.f32 %v1099, %v1099
    %v1116 = vmul.f32 %v1100, %v1100
    %v1117 = vmul.f32 %v1101, %v1101
    %v1118 = vmul.f32 %v1102, %v1102
    %v1119 = vmul.f32 %v1103, %v1103
    %v1120 = vmul.f32 %v1104, %v1104
    %v1121 = vmul.f32 %v1105, %v1105
    %v1122 = vadd.f32 %v1106, %v1107
    %v1123 = vadd.f32 %v1122, %v1108
    %v1124 = vadd.f32 %v1123, %v1109
    %v1125 = vadd.f32 %v1124, %v1110
    %v1126 = vadd.f32 %v1125, %v1111
    %v1127 = vadd.f32 %v1126, %v1112
    %v1128 = vadd.f32 %v1127, %v1113
    %v1129 = vadd.f32 %v1128, %v1114
    %v1130 = vadd.f32 %v1129, %v1115
    %v1131 = vadd.f32 %v1130, %v1116
    %v1132 = vadd.f32 %v1131, %v1117
    %v1133 = vadd.f32 %v1132, %v1118
    %v1134 = vadd.f32 %v1133, %v1119
    %v1135 = vadd.f32 %v1134, %v1120
    %v1136 = vadd.f32 %v1135, %v1121
    %v1137 = vrot.slane %v1136, 4
    %v1138 = vadd.f32 %v1136, %v1137
    %v1139 = vrot.slane %v1138, 2
    %v1140 = vadd.f32 %v1138, %v1139
    %v1141 = vrot.slane %v1140, 1
    %v1142 = vadd.f32 %v1140, %v1141
    %v1143 = vmul.f32 %v1142, %v268
    %v1144 = vld [vmem:[#allocation7 + $0x7] sm:$0x1]
    %v1145 = vadd.f32 %v1143, 1e-05
    %v1146 = vrsqrt.pop %v1145
    %v1147 = vmul.f32 %v1144, %v1146
    %v1148 = vld [vmem:[#allocation7 + $0xb] sm:$0x1]
    %v1149 = vmul.f32 %v1089, %v1147
    %v1150 = vsub.f32 %v1148, %v1149
    %v1151 = vlaneseq
    %v1152 = vshrl.u32 %v1151, 7
    %v1153 = vsub.s32 0, %v1152
    %v1154 = vrot.slane %v1147, %v1153
    %v1155 = vmul.f32 %v1006, %v1154
    %v1156 = vmul.f32 %v1009, %v1154
    %v1157 = vmul.f32 %v1014, %v1154
    %v1158 = vmul.f32 %v1017, %v1154
    %v1159 = vmul.f32 %v1022, %v1154
    %v1160 = vmul.f32 %v1025, %v1154
    %v1161 = vmul.f32 %v1030, %v1154
    %v1162 = vmul.f32 %v1033, %v1154
    %v1163 = vmul.f32 %v1038, %v1154
    %v1164 = vmul.f32 %v1041, %v1154
    %v1165 = vmul.f32 %v1046, %v1154
    %v1166 = vmul.f32 %v1049, %v1154
    %v1167 = vmul.f32 %v1054, %v1154
    %v1168 = vmul.f32 %v1057, %v1154
    %v1169 = vmul.f32 %v1062, %v1154
    %v1170 = vmul.f32 %v1065, %v1154
    %v1171 = vlaneseq
    %v1172 = vshrl.u32 %v1171, 7
    %v1173 = vsub.s32 0, %v1172
    %v1174 = vrot.slane %v1150, %v1173
    %v1175 = vadd.f32 %v1155, %v1174
    %v1176 = vadd.f32 %v1156, %v1174
    %v1177 = vadd.f32 %v1157, %v1174
    %v1178 = vadd.f32 %v1158, %v1174
    %v1179 = vadd.f32 %v1159, %v1174
    %v1180 = vadd.f32 %v1160, %v1174
    %v1181 = vadd.f32 %v1161, %v1174
    %v1182 = vadd.f32 %v1162, %v1174
    %v1183 = vadd.f32 %v1163, %v1174
    %v1184 = vadd.f32 %v1164, %v1174
    %v1185 = vadd.f32 %v1165, %v1174
    %v1186 = vadd.f32 %v1166, %v1174
    %v1187 = vadd.f32 %v1167, %v1174
    %v1188 = vadd.f32 %v1168, %v1174
    %v1189 = vadd.f32 %v1169, %v1174
    %v1190 = vadd.f32 %v1170, %v1174
    %v1191 = vsub.f32 0.0, %v1175
    %v1192 = vsub.f32 0.0, %v1176
    %v1193 = vsub.f32 0.0, %v1177
    %v1194 = vsub.f32 0.0, %v1178
    %v1195 = vsub.f32 0.0, %v1179
    %v1196 = vsub.f32 0.0, %v1180
    %v1197 = vsub.f32 0.0, %v1181
    %v1198 = vsub.f32 0.0, %v1182
    %v1199 = vsub.f32 0.0, %v1183
    %v1200 = vsub.f32 0.0, %v1184
    %v1201 = vsub.f32 0.0, %v1185
    %v1202 = vsub.f32 0.0, %v1186
    %v1203 = vsub.f32 0.0, %v1187
    %v1204 = vsub.f32 0.0, %v1188
    %v1205 = vsub.f32 0.0, %v1189
    %v1206 = vsub.f32 0.0, %v1190
    %v1207 = vmul.f32 %v1191, 1.442695
    %v1208 = vpow.pop %v1207
    %v1209 = vmul.f32 %v1192, 1.442695
    %v1210 = vpow.pop %v1209
    %v1211 = vmul.f32 %v1193, 1.442695
    %v1212 = vpow.pop %v1211
    %v1213 = vmul.f32 %v1194, 1.442695
    %v1214 = vpow.pop %v1213
    %v1215 = vmul.f32 %v1195, 1.442695
    %v1216 = vpow.pop %v1215
    %v1217 = vmul.f32 %v1196, 1.442695
    %v1218 = vpow.pop %v1217
    %v1219 = vmul.f32 %v1197, 1.442695
    %v1220 = vpow.pop %v1219
    %v1221 = vmul.f32 %v1198, 1.442695
    %v1222 = vpow.pop %v1221
    %v1223 = vmul.f32 %v1199, 1.442695
    %v1224 = vpow.pop %v1223
    %v1225 = vmul.f32 %v1200, 1.442695
    %v1226 = vpow.pop %v1225
    %v1227 = vmul.f32 %v1201, 1.442695
    %v1228 = vpow.pop %v1227
    %v1229 = vmul.f32 %v1202, 1.442695
    %v1230 = vpow.pop %v1229
    %v1231 = vmul.f32 %v1203, 1.442695
    %v1232 = vpow.pop %v1231
    %v1233 = vmul.f32 %v1204, 1.442695
    %v1234 = vpow.pop %v1233
    %v1235 = vmul.f32 %v1205, 1.442695
    %v1236 = vpow.pop %v1235
    %v1237 = vmul.f32 %v1206, 1.442695
    %v1238 = vpow.pop %v1237
    %v1239 = vadd.f32 %v1208, 1.0
    %v1240 = vadd.f32 %v1210, 1.0
    %v1241 = vadd.f32 %v1212, 1.0
    %v1242 = vadd.f32 %v1214, 1.0
    %v1243 = vadd.f32 %v1216, 1.0
    %v1244 = vadd.f32 %v1218, 1.0
    %v1245 = vadd.f32 %v1220, 1.0
    %v1246 = vadd.f32 %v1222, 1.0
    %v1247 = vadd.f32 %v1224, 1.0
    %v1248 = vadd.f32 %v1226, 1.0
    %v1249 = vadd.f32 %v1228, 1.0
    %v1250 = vadd.f32 %v1230, 1.0
    %v1251 = vadd.f32 %v1232, 1.0
    %v1252 = vadd.f32 %v1234, 1.0
    %v1253 = vadd.f32 %v1236, 1.0
    %v1254 = vadd.f32 %v1238, 1.0
    %v1255 = vrcp.pop %v1239
    %v1256 = vmul.f32 1.0, %v1255
    %v1257 = vrcp.pop %v1240
    %v1258 = vmul.f32 1.0, %v1257
    %v1259 = vrcp.pop %v1241
    %v1260 = vmul.f32 1.0, %v1259
    %v1261 = vrcp.pop %v1242
    %v1262 = vmul.f32 1.0, %v1261
    %v1263 = vrcp.pop %v1243
    %v1264 = vmul.f32 1.0, %v1263
    %v1265 = vrcp.pop %v1244
    %v1266 = vmul.f32 1.0, %v1265
    %v1267 = vrcp.pop %v1245
    %v1268 = vmul.f32 1.0, %v1267
    %v1269 = vrcp.pop %v1246
    %v1270 = vmul.f32 1.0, %v1269
    %v1271 = vrcp.pop %v1247
    %v1272 = vmul.f32 1.0, %v1271
    %v1273 = vrcp.pop %v1248
    %v1274 = vmul.f32 1.0, %v1273
    %v1275 = vrcp.pop %v1249
    %v1276 = vmul.f32 1.0, %v1275
    %v1277 = vrcp.pop %v1250
    %v1278 = vmul.f32 1.0, %v1277
    %v1279 = vrcp.pop %v1251
    %v1280 = vmul.f32 1.0, %v1279
    %v1281 = vrcp.pop %v1252
    %v1282 = vmul.f32 1.0, %v1281
    %v1283 = vrcp.pop %v1253
    %v1284 = vmul.f32 1.0, %v1283
    %v1285 = vrcp.pop %v1254
    %v1286 = vmul.f32 1.0, %v1285
    %v1287 = vmul.f32 %v1175, %v1256
    %v1288 = vmul.f32 %v1176, %v1258
    %v1289 = vmul.f32 %v1177, %v1260
    %v1290 = vmul.f32 %v1178, %v1262
    %v1291 = vmul.f32 %v1179, %v1264
    %v1292 = vmul.f32 %v1180, %v1266
    %v1293 = vmul.f32 %v1181, %v1268
    %v1294 = vmul.f32 %v1182, %v1270
    %v1295 = vmul.f32 %v1183, %v1272
    %v1296 = vmul.f32 %v1184, %v1274
    %v1297 = vmul.f32 %v1185, %v1276
    %v1298 = vmul.f32 %v1186, %v1278
    %v1299 = vmul.f32 %v1187, %v1280
    %v1300 = vmul.f32 %v1188, %v1282
    %v1301 = vmul.f32 %v1189, %v1284
    %v1302 = vmul.f32 %v1190, %v1286
    %v1303 = vpack.c.bf16 %v1288, %v1287
    %v1304 = vpack.c.bf16 %v1290, %v1289
    %v1305 = vpack.c.bf16 %v1292, %v1291
    %v1306 = vpack.c.bf16 %v1294, %v1293
    %v1307 = vpack.c.bf16 %v1296, %v1295
    %v1308 = vpack.c.bf16 %v1298, %v1297
    %v1309 = vpack.c.bf16 %v1300, %v1299
    %v1310 = vpack.c.bf16 %v1302, %v1301
    %s1311 = scalar_lea.vmem [#allocation5], 192
    %v1312 = vld [vmem:[%s1311] sm:$0xf]
    %v1313 = vld [vmem:[%s1311 + $0x4] sm:$0xf]
    %v1314 = vld [vmem:[%s1311 + $0x8] sm:$0xf]
    %v1315 = vld [vmem:[%s1311 + $0xc] sm:$0xf]
    %v1316 = vld [vmem:[%s1311 + $0x10] sm:$0xf]
    %v1317 = vld [vmem:[%s1311 + $0x14] sm:$0xf]
    %v1318 = vld [vmem:[%s1311 + $0x18] sm:$0xf]
    %v1319 = vld [vmem:[%s1311 + $0x1c] sm:$0xf]
    %v1320 = vld [vmem:[%s1311 + $0x20] sm:$0xf]
    %v1321 = vld [vmem:[%s1311 + $0x24] sm:$0xf]
    %v1322 = vld [vmem:[%s1311 + $0x28] sm:$0xf]
    %v1323 = vld [vmem:[%s1311 + $0x2c] sm:$0xf]
    %v1324 = vld [vmem:[%s1311 + $0x30] sm:$0xf]
    %v1325 = vld [vmem:[%s1311 + $0x34] sm:$0xf]
    %v1326 = vld [vmem:[%s1311 + $0x38] sm:$0xf]
    %v1327 = vld [vmem:[%s1311 + $0x3c] sm:$0xf]
    %v1328 = vld [vmem:[#allocation7 + $0x3] sm:$0x1]
    %v1329 = vlaneseq
    %v1330 = vshrl.u32 %v1329, 7
    %v1331 = vsub.s32 0, %v1330
    %v1332 = vrot.slane %v1328, %v1331
    %v1349 = vunpack.c.l.b16 %v1312
    %v1350 = vunpack.c.l.b16 %v1313
    %v1351 = vunpack.c.l.b16 %v1314
    %v1352 = vunpack.c.l.b16 %v1315
    %v1353 = vunpack.c.l.b16 %v1316
    %v1354 = vunpack.c.l.b16 %v1317
    %v1355 = vunpack.c.l.b16 %v1318
    %v1356 = vunpack.c.l.b16 %v1319
    %v1357 = vunpack.c.l.b16 %v1320
    %v1358 = vunpack.c.l.b16 %v1321
    %v1359 = vunpack.c.l.b16 %v1322
    %v1360 = vunpack.c.l.b16 %v1323
    %v1361 = vunpack.c.l.b16 %v1324
    %v1362 = vunpack.c.l.b16 %v1325
    %v1363 = vunpack.c.l.b16 %v1326
    %v1364 = vunpack.c.l.b16 %v1327
    %v1365 = vpack.c.b16 %v1350, %v1349
    %v1366 = vpack.c.b16 %v1352, %v1351
    %v1367 = vpack.c.b16 %v1354, %v1353
    %v1368 = vpack.c.b16 %v1356, %v1355
    %v1369 = vpack.c.b16 %v1358, %v1357
    %v1370 = vpack.c.b16 %v1360, %v1359
    %v1371 = vpack.c.b16 %v1362, %v1361
    %v1372 = vpack.c.b16 %v1364, %v1363
    %1381 = vmatprep.subr.bf16.mxu0 0
    %1382 = vmatpush1.bf16.msra.mxu0 %v1365
    %1383 = vmatprep.subr.bf16.mxu0 0
    %1384 = vmatpush1.bf16.msra.mxu0 %v1366
    %1385 = vmatprep.subr.bf16.mxu0 0
    %1386 = vmatpush1.bf16.msra.mxu0 %v1367
    %1387 = vmatprep.subr.bf16.mxu0 0
    %1388 = vmatpush1.bf16.msra.mxu0 %v1368
    %1389 = vmatprep.subr.bf16.mxu0 0
    %1390 = vmatpush1.bf16.msra.mxu0 %v1369
    %1391 = vmatprep.subr.bf16.mxu0 0
    %1392 = vmatpush1.bf16.msra.mxu0 %v1370
    %1393 = vmatprep.subr.bf16.mxu0 0
    %1394 = vmatpush1.bf16.msra.mxu0 %v1371
    %1395 = vmatprep.subr.bf16.mxu0 0
    %1396 = vmatpush1.bf16.msra.mxu0 %v1372
    %1397 = vmatprep.subr.bf16.mxu0 0
    %1398 = vmatpush1.bf16.msra.mxu0 0
    %1399 = vmatprep.subr.bf16.mxu0 0
    %1400 = vmatpush1.bf16.msra.mxu0 0
    %1401 = vmatprep.subr.bf16.mxu0 0
    %1402 = vmatpush1.bf16.msra.mxu0 0
    %1403 = vmatprep.subr.bf16.mxu0 0
    %1404 = vmatpush1.bf16.msra.mxu0 0
    %1405 = vmatprep.subr.bf16.mxu0 0
    %1406 = vmatpush1.bf16.msra.mxu0 0
    %1407 = vmatprep.subr.bf16.mxu0 0
    %1408 = vmatpush1.bf16.msra.mxu0 0
    %1409 = vmatprep.subr.bf16.mxu0 0
    %1410 = vmatpush1.bf16.msra.mxu0 0
    %1411 = vmatprep.subr.bf16.mxu0 0
    %1412 = vmatpush1.bf16.msra.mxu0 0
    %1413 = vmatprep.mubr.bf16.mxu0 0
    %1414 = vmatmul.mubr.bf16.gmra.mrb[0].mxu0 %v1303
    %v1415 = vpop.f32.mrb[0].mxu0
    %v1416 = vadd.f32 %v1332, %v1415
    %v1417 = vpop.f32.mrb[0].mxu0
    %v1418 = vpop.f32.mrb[0].mxu0
    %v1419 = vadd.f32 %v1332, %v1418
    %v1420 = vpop.f32.mrb[0].mxu0
    %1421 = vmatprep.mubr.bf16.mxu0 0
    %1422 = vmatmul.mubr.bf16.gmra.mrb[0].mxu0 %v1304
    %v1423 = vpop.f32.mrb[0].mxu0
    %v1424 = vadd.f32 %v1332, %v1423
    %v1425 = vpop.f32.mrb[0].mxu0
    %v1426 = vpop.f32.mrb[0].mxu0
    %v1427 = vadd.f32 %v1332, %v1426
    %v1428 = vpop.f32.mrb[0].mxu0
    %1429 = vmatprep.mubr.bf16.mxu0 0
    %1430 = vmatmul.mubr.bf16.gmra.mrb[0].mxu0 %v1305
    %v1431 = vpop.f32.mrb[0].mxu0
    %v1432 = vadd.f32 %v1332, %v1431
    %v1433 = vpop.f32.mrb[0].mxu0
    %v1434 = vpop.f32.mrb[0].mxu0
    %v1435 = vadd.f32 %v1332, %v1434
    %v1436 = vpop.f32.mrb[0].mxu0
    %1437 = vmatprep.mubr.bf16.mxu0 0
    %1438 = vmatmul.mubr.bf16.gmra.mrb[0].mxu0 %v1306
    %v1439 = vpop.f32.mrb[0].mxu0
    %v1440 = vadd.f32 %v1332, %v1439
    %v1441 = vpop.f32.mrb[0].mxu0
    %v1442 = vpop.f32.mrb[0].mxu0
    %v1443 = vadd.f32 %v1332, %v1442
    %v1444 = vpop.f32.mrb[0].mxu0
    %1445 = vmatprep.mubr.bf16.mxu0 0
    %1446 = vmatmul.mubr.bf16.gmra.mrb[0].mxu0 %v1307
    %v1447 = vpop.f32.mrb[0].mxu0
    %v1448 = vadd.f32 %v1332, %v1447
    %v1449 = vpop.f32.mrb[0].mxu0
    %v1450 = vpop.f32.mrb[0].mxu0
    %v1451 = vadd.f32 %v1332, %v1450
    %v1452 = vpop.f32.mrb[0].mxu0
    %1453 = vmatprep.mubr.bf16.mxu0 0
    %1454 = vmatmul.mubr.bf16.gmra.mrb[0].mxu0 %v1308
    %v1455 = vpop.f32.mrb[0].mxu0
    %v1456 = vadd.f32 %v1332, %v1455
    %v1457 = vpop.f32.mrb[0].mxu0
    %v1458 = vpop.f32.mrb[0].mxu0
    %v1459 = vadd.f32 %v1332, %v1458
    %v1460 = vpop.f32.mrb[0].mxu0
    %1461 = vmatprep.mubr.bf16.mxu0 0
    %1462 = vmatmul.mubr.bf16.gmra.mrb[0].mxu0 %v1309
    %v1463 = vpop.f32.mrb[0].mxu0
    %v1464 = vadd.f32 %v1332, %v1463
    %v1465 = vpop.f32.mrb[0].mxu0
    %v1466 = vpop.f32.mrb[0].mxu0
    %v1467 = vadd.f32 %v1332, %v1466
    %v1468 = vpop.f32.mrb[0].mxu0
    %1469 = vmatprep.mubr.bf16.mxu0 0
    %1470 = vmatmul.mubr.bf16.gmra.mrb[0].mxu0 %v1310
    %v1471 = vpop.f32.mrb[0].mxu0
    %v1472 = vadd.f32 %v1332, %v1471
    %v1473 = vpop.f32.mrb[0].mxu0
    %v1474 = vpop.f32.mrb[0].mxu0
    %v1475 = vadd.f32 %v1332, %v1474
    %v1476 = vpop.f32.mrb[0].mxu0
    %1477 = vdwg.mxu0
    %v1478 = vadd.f32 %v1416, %v1419
    %v1479 = vadd.f32 %v1478, %v1424
    %v1480 = vadd.f32 %v1479, %v1427
    %v1481 = vadd.f32 %v1480, %v1432
    %v1482 = vadd.f32 %v1481, %v1435
    %v1483 = vadd.f32 %v1482, %v1440
    %v1484 = vadd.f32 %v1483, %v1443
    %v1485 = vadd.f32 %v1484, %v1448
    %v1486 = vadd.f32 %v1485, %v1451
    %v1487 = vadd.f32 %v1486, %v1456
    %v1488 = vadd.f32 %v1487, %v1459
    %v1489 = vadd.f32 %v1488, %v1464
    %v1490 = vadd.f32 %v1489, %v1467
    %v1491 = vadd.f32 %v1490, %v1472
    %v1492 = vadd.f32 %v1491, %v1475
    %v1493 = vrot.slane %v1492, 4
    %v1494 = vadd.f32 %v1492, %v1493
    %v1495 = vrot.slane %v1494, 2
    %v1496 = vadd.f32 %v1494, %v1495
    %v1497 = vrot.slane %v1496, 1
    %v1498 = vadd.f32 %v1496, %v1497
    %v1499 = vmul.f32 %v1498, %v268
    %v1500 = vsub.f32 %v1416, %v1499
    %v1501 = vsub.f32 %v1419, %v1499
    %v1502 = vsub.f32 %v1424, %v1499
    %v1503 = vsub.f32 %v1427, %v1499
    %v1504 = vsub.f32 %v1432, %v1499
    %v1505 = vsub.f32 %v1435, %v1499
    %v1506 = vsub.f32 %v1440, %v1499
    %v1507 = vsub.f32 %v1443, %v1499
    %v1508 = vsub.f32 %v1448, %v1499
    %v1509 = vsub.f32 %v1451, %v1499
    %v1510 = vsub.f32 %v1456, %v1499
    %v1511 = vsub.f32 %v1459, %v1499
    %v1512 = vsub.f32 %v1464, %v1499
    %v1513 = vsub.f32 %v1467, %v1499
    %v1514 = vsub.f32 %v1472, %v1499
    %v1515 = vsub.f32 %v1475, %v1499
    %v1516 = vmul.f32 %v1500, %v1500
    %v1517 = vmul.f32 %v1501, %v1501
    %v1518 = vmul.f32 %v1502, %v1502
    %v1519 = vmul.f32 %v1503, %v1503
    %v1520 = vmul.f32 %v1504, %v1504
    %v1521 = vmul.f32 %v1505, %v1505
    %v1522 = vmul.f32 %v1506, %v1506
    %v1523 = vmul.f32 %v1507, %v1507
    %v1524 = vmul.f32 %v1508, %v1508
    %v1525 = vmul.f32 %v1509, %v1509
    %v1526 = vmul.f32 %v1510, %v1510
    %v1527 = vmul.f32 %v1511, %v1511
    %v1528 = vmul.f32 %v1512, %v1512
    %v1529 = vmul.f32 %v1513, %v1513
    %v1530 = vmul.f32 %v1514, %v1514
    %v1531 = vmul.f32 %v1515, %v1515
    %v1532 = vadd.f32 %v1516, %v1517
    %v1533 = vadd.f32 %v1532, %v1518
    %v1534 = vadd.f32 %v1533, %v1519
    %v1535 = vadd.f32 %v1534, %v1520
    %v1536 = vadd.f32 %v1535, %v1521
    %v1537 = vadd.f32 %v1536, %v1522
    %v1538 = vadd.f32 %v1537, %v1523
    %v1539 = vadd.f32 %v1538, %v1524
    %v1540 = vadd.f32 %v1539, %v1525
    %v1541 = vadd.f32 %v1540, %v1526
    %v1542 = vadd.f32 %v1541, %v1527
    %v1543 = vadd.f32 %v1542, %v1528
    %v1544 = vadd.f32 %v1543, %v1529
    %v1545 = vadd.f32 %v1544, %v1530
    %v1546 = vadd.f32 %v1545, %v1531
    %v1547 = vrot.slane %v1546, 4
    %v1548 = vadd.f32 %v1546, %v1547
    %v1549 = vrot.slane %v1548, 2
    %v1550 = vadd.f32 %v1548, %v1549
    %v1551 = vrot.slane %v1550, 1
    %v1552 = vadd.f32 %v1550, %v1551
    %v1553 = vmul.f32 %v1552, %v268
    %v1554 = vld [vmem:[#allocation7 + $0x8] sm:$0x1]
    %v1555 = vadd.f32 %v1553, 1e-05
    %v1556 = vrsqrt.pop %v1555
    %v1557 = vmul.f32 %v1554, %v1556
    %v1558 = vld [vmem:[#allocation7 + $0xc] sm:$0x1]
    %v1559 = vmul.f32 %v1499, %v1557
    %v1560 = vsub.f32 %v1558, %v1559
    %v1561 = vlaneseq
    %v1562 = vshrl.u32 %v1561, 7
    %v1563 = vsub.s32 0, %v1562
    %v1564 = vrot.slane %v1557, %v1563
    %v1565 = vmul.f32 %v1416, %v1564
    %v1566 = vmul.f32 %v1419, %v1564
    %v1567 = vmul.f32 %v1424, %v1564
    %v1568 = vmul.f32 %v1427, %v1564
    %v1569 = vmul.f32 %v1432, %v1564
    %v1570 = vmul.f32 %v1435, %v1564
    %v1571 = vmul.f32 %v1440, %v1564
    %v1572 = vmul.f32 %v1443, %v1564
    %v1573 = vmul.f32 %v1448, %v1564
    %v1574 = vmul.f32 %v1451, %v1564
    %v1575 = vmul.f32 %v1456, %v1564
    %v1576 = vmul.f32 %v1459, %v1564
    %v1577 = vmul.f32 %v1464, %v1564
    %v1578 = vmul.f32 %v1467, %v1564
    %v1579 = vmul.f32 %v1472, %v1564
    %v1580 = vmul.f32 %v1475, %v1564
    %v1581 = vlaneseq
    %v1582 = vshrl.u32 %v1581, 7
    %v1583 = vsub.s32 0, %v1582
    %v1584 = vrot.slane %v1560, %v1583
    %v1585 = vadd.f32 %v1565, %v1584
    %v1586 = vadd.f32 %v1566, %v1584
    %v1587 = vadd.f32 %v1567, %v1584
    %v1588 = vadd.f32 %v1568, %v1584
    %v1589 = vadd.f32 %v1569, %v1584
    %v1590 = vadd.f32 %v1570, %v1584
    %v1591 = vadd.f32 %v1571, %v1584
    %v1592 = vadd.f32 %v1572, %v1584
    %v1593 = vadd.f32 %v1573, %v1584
    %v1594 = vadd.f32 %v1574, %v1584
    %v1595 = vadd.f32 %v1575, %v1584
    %v1596 = vadd.f32 %v1576, %v1584
    %v1597 = vadd.f32 %v1577, %v1584
    %v1598 = vadd.f32 %v1578, %v1584
    %v1599 = vadd.f32 %v1579, %v1584
    %v1600 = vadd.f32 %v1580, %v1584
    %v1601 = vsub.f32 0.0, %v1585
    %v1602 = vsub.f32 0.0, %v1586
    %v1603 = vsub.f32 0.0, %v1587
    %v1604 = vsub.f32 0.0, %v1588
    %v1605 = vsub.f32 0.0, %v1589
    %v1606 = vsub.f32 0.0, %v1590
    %v1607 = vsub.f32 0.0, %v1591
    %v1608 = vsub.f32 0.0, %v1592
    %v1609 = vsub.f32 0.0, %v1593
    %v1610 = vsub.f32 0.0, %v1594
    %v1611 = vsub.f32 0.0, %v1595
    %v1612 = vsub.f32 0.0, %v1596
    %v1613 = vsub.f32 0.0, %v1597
    %v1614 = vsub.f32 0.0, %v1598
    %v1615 = vsub.f32 0.0, %v1599
    %v1616 = vsub.f32 0.0, %v1600
    %v1617 = vmul.f32 %v1601, 1.442695
    %v1618 = vpow.pop %v1617
    %v1619 = vmul.f32 %v1602, 1.442695
    %v1620 = vpow.pop %v1619
    %v1621 = vmul.f32 %v1603, 1.442695
    %v1622 = vpow.pop %v1621
    %v1623 = vmul.f32 %v1604, 1.442695
    %v1624 = vpow.pop %v1623
    %v1625 = vmul.f32 %v1605, 1.442695
    %v1626 = vpow.pop %v1625
    %v1627 = vmul.f32 %v1606, 1.442695
    %v1628 = vpow.pop %v1627
    %v1629 = vmul.f32 %v1607, 1.442695
    %v1630 = vpow.pop %v1629
    %v1631 = vmul.f32 %v1608, 1.442695
    %v1632 = vpow.pop %v1631
    %v1633 = vmul.f32 %v1609, 1.442695
    %v1634 = vpow.pop %v1633
    %v1635 = vmul.f32 %v1610, 1.442695
    %v1636 = vpow.pop %v1635
    %v1637 = vmul.f32 %v1611, 1.442695
    %v1638 = vpow.pop %v1637
    %v1639 = vmul.f32 %v1612, 1.442695
    %v1640 = vpow.pop %v1639
    %v1641 = vmul.f32 %v1613, 1.442695
    %v1642 = vpow.pop %v1641
    %v1643 = vmul.f32 %v1614, 1.442695
    %v1644 = vpow.pop %v1643
    %v1645 = vmul.f32 %v1615, 1.442695
    %v1646 = vpow.pop %v1645
    %v1647 = vmul.f32 %v1616, 1.442695
    %v1648 = vpow.pop %v1647
    %v1649 = vadd.f32 %v1618, 1.0
    %v1650 = vadd.f32 %v1620, 1.0
    %v1651 = vadd.f32 %v1622, 1.0
    %v1652 = vadd.f32 %v1624, 1.0
    %v1653 = vadd.f32 %v1626, 1.0
    %v1654 = vadd.f32 %v1628, 1.0
    %v1655 = vadd.f32 %v1630, 1.0
    %v1656 = vadd.f32 %v1632, 1.0
    %v1657 = vadd.f32 %v1634, 1.0
    %v1658 = vadd.f32 %v1636, 1.0
    %v1659 = vadd.f32 %v1638, 1.0
    %v1660 = vadd.f32 %v1640, 1.0
    %v1661 = vadd.f32 %v1642, 1.0
    %v1662 = vadd.f32 %v1644, 1.0
    %v1663 = vadd.f32 %v1646, 1.0
    %v1664 = vadd.f32 %v1648, 1.0
    %v1665 = vrcp.pop %v1649
    %v1666 = vmul.f32 1.0, %v1665
    %v1667 = vrcp.pop %v1650
    %v1668 = vmul.f32 1.0, %v1667
    %v1669 = vrcp.pop %v1651
    %v1670 = vmul.f32 1.0, %v1669
    %v1671 = vrcp.pop %v1652
    %v1672 = vmul.f32 1.0, %v1671
    %v1673 = vrcp.pop %v1653
    %v1674 = vmul.f32 1.0, %v1673
    %v1675 = vrcp.pop %v1654
    %v1676 = vmul.f32 1.0, %v1675
    %v1677 = vrcp.pop %v1655
    %v1678 = vmul.f32 1.0, %v1677
    %v1679 = vrcp.pop %v1656
    %v1680 = vmul.f32 1.0, %v1679
    %v1681 = vrcp.pop %v1657
    %v1682 = vmul.f32 1.0, %v1681
    %v1683 = vrcp.pop %v1658
    %v1684 = vmul.f32 1.0, %v1683
    %v1685 = vrcp.pop %v1659
    %v1686 = vmul.f32 1.0, %v1685
    %v1687 = vrcp.pop %v1660
    %v1688 = vmul.f32 1.0, %v1687
    %v1689 = vrcp.pop %v1661
    %v1690 = vmul.f32 1.0, %v1689
    %v1691 = vrcp.pop %v1662
    %v1692 = vmul.f32 1.0, %v1691
    %v1693 = vrcp.pop %v1663
    %v1694 = vmul.f32 1.0, %v1693
    %v1695 = vrcp.pop %v1664
    %v1696 = vmul.f32 1.0, %v1695
    %v1697 = vmul.f32 %v1585, %v1666
    %v1698 = vmul.f32 %v1586, %v1668
    %v1699 = vmul.f32 %v1587, %v1670
    %v1700 = vmul.f32 %v1588, %v1672
    %v1701 = vmul.f32 %v1589, %v1674
    %v1702 = vmul.f32 %v1590, %v1676
    %v1703 = vmul.f32 %v1591, %v1678
    %v1704 = vmul.f32 %v1592, %v1680
    %v1705 = vmul.f32 %v1593, %v1682
    %v1706 = vmul.f32 %v1594, %v1684
    %v1707 = vmul.f32 %v1595, %v1686
    %v1708 = vmul.f32 %v1596, %v1688
    %v1709 = vmul.f32 %v1597, %v1690
    %v1710 = vmul.f32 %v1598, %v1692
    %v1711 = vmul.f32 %v1599, %v1694
    %v1712 = vmul.f32 %v1600, %v1696
    %v1713 = vpack.c.bf16 %v1698, %v1697
    %v1714 = vpack.c.bf16 %v1700, %v1699
    %v1715 = vpack.c.bf16 %v1702, %v1701
    %v1716 = vpack.c.bf16 %v1704, %v1703
    %v1717 = vpack.c.bf16 %v1706, %v1705
    %v1718 = vpack.c.bf16 %v1708, %v1707
    %v1719 = vpack.c.bf16 %v1710, %v1709
    %v1720 = vpack.c.bf16 %v1712, %v1711
    %s1721 = scalar_lea.vmem [#allocation5], 256
    %v1722 = vld [vmem:[%s1721] sm:$0xf]
    %v1723 = vld [vmem:[%s1721 + $0x4] sm:$0xf]
    %v1724 = vld [vmem:[%s1721 + $0x8] sm:$0xf]
    %v1725 = vld [vmem:[%s1721 + $0xc] sm:$0xf]
    %v1726 = vld [vmem:[%s1721 + $0x10] sm:$0xf]
    %v1727 = vld [vmem:[%s1721 + $0x14] sm:$0xf]
    %v1728 = vld [vmem:[%s1721 + $0x18] sm:$0xf]
    %v1729 = vld [vmem:[%s1721 + $0x1c] sm:$0xf]
    %v1730 = vld [vmem:[%s1721 + $0x20] sm:$0xf]
    %v1731 = vld [vmem:[%s1721 + $0x24] sm:$0xf]
    %v1732 = vld [vmem:[%s1721 + $0x28] sm:$0xf]
    %v1733 = vld [vmem:[%s1721 + $0x2c] sm:$0xf]
    %v1734 = vld [vmem:[%s1721 + $0x30] sm:$0xf]
    %v1735 = vld [vmem:[%s1721 + $0x34] sm:$0xf]
    %v1736 = vld [vmem:[%s1721 + $0x38] sm:$0xf]
    %v1737 = vld [vmem:[%s1721 + $0x3c] sm:$0xf]
    %v1738 = vld [vmem:[#allocation7 + $0x4] sm:$0x1]
    %v1739 = vlaneseq
    %v1740 = vshrl.u32 %v1739, 7
    %v1741 = vsub.s32 0, %v1740
    %v1742 = vrot.slane %v1738, %v1741
    %v1759 = vunpack.c.l.b16 %v1722
    %v1760 = vunpack.c.l.b16 %v1723
    %v1761 = vunpack.c.l.b16 %v1724
    %v1762 = vunpack.c.l.b16 %v1725
    %v1763 = vunpack.c.l.b16 %v1726
    %v1764 = vunpack.c.l.b16 %v1727
    %v1765 = vunpack.c.l.b16 %v1728
    %v1766 = vunpack.c.l.b16 %v1729
    %v1767 = vunpack.c.l.b16 %v1730
    %v1768 = vunpack.c.l.b16 %v1731
    %v1769 = vunpack.c.l.b16 %v1732
    %v1770 = vunpack.c.l.b16 %v1733
    %v1771 = vunpack.c.l.b16 %v1734
    %v1772 = vunpack.c.l.b16 %v1735
    %v1773 = vunpack.c.l.b16 %v1736
    %v1774 = vunpack.c.l.b16 %v1737
    %v1775 = vpack.c.b16 %v1760, %v1759
    %v1776 = vpack.c.b16 %v1762, %v1761
    %v1777 = vpack.c.b16 %v1764, %v1763
    %v1778 = vpack.c.b16 %v1766, %v1765
    %v1779 = vpack.c.b16 %v1768, %v1767
    %v1780 = vpack.c.b16 %v1770, %v1769
    %v1781 = vpack.c.b16 %v1772, %v1771
    %v1782 = vpack.c.b16 %v1774, %v1773
    %1791 = vmatprep.subr.bf16.mxu0 0
    %1792 = vmatpush1.bf16.msra.mxu0 %v1775
    %1793 = vmatprep.subr.bf16.mxu0 0
    %1794 = vmatpush1.bf16.msra.mxu0 %v1776
    %1795 = vmatprep.subr.bf16.mxu0 0
    %1796 = vmatpush1.bf16.msra.mxu0 %v1777
    %1797 = vmatprep.subr.bf16.mxu0 0
    %1798 = vmatpush1.bf16.msra.mxu0 %v1778
    %1799 = vmatprep.subr.bf16.mxu0 0
    %1800 = vmatpush1.bf16.msra.mxu0 %v1779
    %1801 = vmatprep.subr.bf16.mxu0 0
    %1802 = vmatpush1.bf16.msra.mxu0 %v1780
    %1803 = vmatprep.subr.bf16.mxu0 0
    %1804 = vmatpush1.bf16.msra.mxu0 %v1781
    %1805 = vmatprep.subr.bf16.mxu0 0
    %1806 = vmatpush1.bf16.msra.mxu0 %v1782
    %1807 = vmatprep.subr.bf16.mxu0 0
    %1808 = vmatpush1.bf16.msra.mxu0 0
    %1809 = vmatprep.subr.bf16.mxu0 0
    %1810 = vmatpush1.bf16.msra.mxu0 0
    %1811 = vmatprep.subr.bf16.mxu0 0
    %1812 = vmatpush1.bf16.msra.mxu0 0
    %1813 = vmatprep.subr.bf16.mxu0 0
    %1814 = vmatpush1.bf16.msra.mxu0 0
    %1815 = vmatprep.subr.bf16.mxu0 0
    %1816 = vmatpush1.bf16.msra.mxu0 0
    %1817 = vmatprep.subr.bf16.mxu0 0
    %1818 = vmatpush1.bf16.msra.mxu0 0
    %1819 = vmatprep.subr.bf16.mxu0 0
    %1820 = vmatpush1.bf16.msra.mxu0 0
    %1821 = vmatprep.subr.bf16.mxu0 0
    %1822 = vmatpush1.bf16.msra.mxu0 0
    %1823 = vmatprep.mubr.bf16.mxu0 0
    %1824 = vmatmul.mubr.bf16.gmra.mrb[0].mxu0 %v1713
    %v1825 = vpop.f32.mrb[0].mxu0
    %v1826 = vadd.f32 %v1742, %v1825
    %v1827 = vpop.f32.mrb[0].mxu0
    %v1828 = vpop.f32.mrb[0].mxu0
    %v1829 = vadd.f32 %v1742, %v1828
    %v1830 = vpop.f32.mrb[0].mxu0
    %1831 = vmatprep.mubr.bf16.mxu0 0
    %1832 = vmatmul.mubr.bf16.gmra.mrb[0].mxu0 %v1714
    %v1833 = vpop.f32.mrb[0].mxu0
    %v1834 = vadd.f32 %v1742, %v1833
    %v1835 = vpop.f32.mrb[0].mxu0
    %v1836 = vpop.f32.mrb[0].mxu0
    %v1837 = vadd.f32 %v1742, %v1836
    %v1838 = vpop.f32.mrb[0].mxu0
    %1839 = vmatprep.mubr.bf16.mxu0 0
    %1840 = vmatmul.mubr.bf16.gmra.mrb[0].mxu0 %v1715
    %v1841 = vpop.f32.mrb[0].mxu0
    %v1842 = vadd.f32 %v1742, %v1841
    %v1843 = vpop.f32.mrb[0].mxu0
    %v1844 = vpop.f32.mrb[0].mxu0
    %v1845 = vadd.f32 %v1742, %v1844
    %v1846 = vpop.f32.mrb[0].mxu0
    %1847 = vmatprep.mubr.bf16.mxu0 0
    %1848 = vmatmul.mubr.bf16.gmra.mrb[0].mxu0 %v1716
    %v1849 = vpop.f32.mrb[0].mxu0
    %v1850 = vadd.f32 %v1742, %v1849
    %v1851 = vpop.f32.mrb[0].mxu0
    %v1852 = vpop.f32.mrb[0].mxu0
    %v1853 = vadd.f32 %v1742, %v1852
    %v1854 = vpop.f32.mrb[0].mxu0
    %1855 = vmatprep.mubr.bf16.mxu0 0
    %1856 = vmatmul.mubr.bf16.gmra.mrb[0].mxu0 %v1717
    %v1857 = vpop.f32.mrb[0].mxu0
    %v1858 = vadd.f32 %v1742, %v1857
    %v1859 = vpop.f32.mrb[0].mxu0
    %v1860 = vpop.f32.mrb[0].mxu0
    %v1861 = vadd.f32 %v1742, %v1860
    %v1862 = vpop.f32.mrb[0].mxu0
    %1863 = vmatprep.mubr.bf16.mxu0 0
    %1864 = vmatmul.mubr.bf16.gmra.mrb[0].mxu0 %v1718
    %v1865 = vpop.f32.mrb[0].mxu0
    %v1866 = vadd.f32 %v1742, %v1865
    %v1867 = vpop.f32.mrb[0].mxu0
    %v1868 = vpop.f32.mrb[0].mxu0
    %v1869 = vadd.f32 %v1742, %v1868
    %v1870 = vpop.f32.mrb[0].mxu0
    %1871 = vmatprep.mubr.bf16.mxu0 0
    %1872 = vmatmul.mubr.bf16.gmra.mrb[0].mxu0 %v1719
    %v1873 = vpop.f32.mrb[0].mxu0
    %v1874 = vadd.f32 %v1742, %v1873
    %v1875 = vpop.f32.mrb[0].mxu0
    %v1876 = vpop.f32.mrb[0].mxu0
    %v1877 = vadd.f32 %v1742, %v1876
    %v1878 = vpop.f32.mrb[0].mxu0
    %1879 = vmatprep.mubr.bf16.mxu0 0
    %1880 = vmatmul.mubr.bf16.gmra.mrb[0].mxu0 %v1720
    %v1881 = vpop.f32.mrb[0].mxu0
    %v1882 = vadd.f32 %v1742, %v1881
    %v1883 = vpop.f32.mrb[0].mxu0
    %v1884 = vpop.f32.mrb[0].mxu0
    %v1885 = vadd.f32 %v1742, %v1884
    %v1886 = vpop.f32.mrb[0].mxu0
    %1887 = vdwg.mxu0
    %vm1888 = vcmp.gt.f32.partialorder %v1826, 0.0
    %vm1889 = vcmp.gt.f32.partialorder %v1829, 0.0
    %vm1890 = vcmp.gt.f32.partialorder %v1834, 0.0
    %vm1891 = vcmp.gt.f32.partialorder %v1837, 0.0
    %vm1892 = vcmp.gt.f32.partialorder %v1842, 0.0
    %vm1893 = vcmp.gt.f32.partialorder %v1845, 0.0
    %vm1894 = vcmp.gt.f32.partialorder %v1850, 0.0
    %vm1895 = vcmp.gt.f32.partialorder %v1853, 0.0
    %vm1896 = vcmp.gt.f32.partialorder %v1858, 0.0
    %vm1897 = vcmp.gt.f32.partialorder %v1861, 0.0
    %vm1898 = vcmp.gt.f32.partialorder %v1866, 0.0
    %vm1899 = vcmp.gt.f32.partialorder %v1869, 0.0
    %vm1900 = vcmp.gt.f32.partialorder %v1874, 0.0
    %vm1901 = vcmp.gt.f32.partialorder %v1877, 0.0
    %vm1902 = vcmp.gt.f32.partialorder %v1882, 0.0
    %vm1903 = vcmp.gt.f32.partialorder %v1885, 0.0
    %v1904 = vmul.f32 %v1826, 1.442695
    %v1905 = vpow.pop %v1904
    %v1906 = vmul.f32 %v1829, 1.442695
    %v1907 = vpow.pop %v1906
    %v1908 = vmul.f32 %v1834, 1.442695
    %v1909 = vpow.pop %v1908
    %v1910 = vmul.f32 %v1837, 1.442695
    %v1911 = vpow.pop %v1910
    %v1912 = vmul.f32 %v1842, 1.442695
    %v1913 = vpow.pop %v1912
    %v1914 = vmul.f32 %v1845, 1.442695
    %v1915 = vpow.pop %v1914
    %v1916 = vmul.f32 %v1850, 1.442695
    %v1917 = vpow.pop %v1916
    %v1918 = vmul.f32 %v1853, 1.442695
    %v1919 = vpow.pop %v1918
    %v1920 = vmul.f32 %v1858, 1.442695
    %v1921 = vpow.pop %v1920
    %v1922 = vmul.f32 %v1861, 1.442695
    %v1923 = vpow.pop %v1922
    %v1924 = vmul.f32 %v1866, 1.442695
    %v1925 = vpow.pop %v1924
    %v1926 = vmul.f32 %v1869, 1.442695
    %v1927 = vpow.pop %v1926
    %v1928 = vmul.f32 %v1874, 1.442695
    %v1929 = vpow.pop %v1928
    %v1930 = vmul.f32 %v1877, 1.442695
    %v1931 = vpow.pop %v1930
    %v1932 = vmul.f32 %v1882, 1.442695
    %v1933 = vpow.pop %v1932
    %v1934 = vmul.f32 %v1885, 1.442695
    %v1935 = vpow.pop %v1934
    %v1936 = vsub.f32 %v1905, 1.0
    %v1937 = vsub.f32 %v1907, 1.0
    %v1938 = vsub.f32 %v1909, 1.0
    %v1939 = vsub.f32 %v1911, 1.0
    %v1940 = vsub.f32 %v1913, 1.0
    %v1941 = vsub.f32 %v1915, 1.0
    %v1942 = vsub.f32 %v1917, 1.0
    %v1943 = vsub.f32 %v1919, 1.0
    %v1944 = vsub.f32 %v1921, 1.0
    %v1945 = vsub.f32 %v1923, 1.0
    %v1946 = vsub.f32 %v1925, 1.0
    %v1947 = vsub.f32 %v1927, 1.0
    %v1948 = vsub.f32 %v1929, 1.0
    %v1949 = vsub.f32 %v1931, 1.0
    %v1950 = vsub.f32 %v1933, 1.0
    %v1951 = vsub.f32 %v1935, 1.0
    %v1952 = vsel %vm1888, %v1826, %v1936
    %v1953 = vsel %vm1889, %v1829, %v1937
    %v1954 = vsel %vm1890, %v1834, %v1938
    %v1955 = vsel %vm1891, %v1837, %v1939
    %v1956 = vsel %vm1892, %v1842, %v1940
    %v1957 = vsel %vm1893, %v1845, %v1941
    %v1958 = vsel %vm1894, %v1850, %v1942
    %v1959 = vsel %vm1895, %v1853, %v1943
    %v1960 = vsel %vm1896, %v1858, %v1944
    %v1961 = vsel %vm1897, %v1861, %v1945
    %v1962 = vsel %vm1898, %v1866, %v1946
    %v1963 = vsel %vm1899, %v1869, %v1947
    %v1964 = vsel %vm1900, %v1874, %v1948
    %v1965 = vsel %vm1901, %v1877, %v1949
    %v1966 = vsel %vm1902, %v1882, %v1950
    %v1967 = vsel %vm1903, %v1885, %v1951
    %1968 = vst [vmem:[#allocation8] sm:$0xff] %v1952
    %1969 = vst [vmem:[#allocation8 + $0x8] sm:$0xff] %v1953
    %1970 = vst [vmem:[#allocation8 + $0x10] sm:$0xff] %v1954
    %1971 = vst [vmem:[#allocation8 + $0x18] sm:$0xff] %v1955
    %1972 = vst [vmem:[#allocation8 + $0x20] sm:$0xff] %v1956
    %1973 = vst [vmem:[#allocation8 + $0x28] sm:$0xff] %v1957
    %1974 = vst [vmem:[#allocation8 + $0x30] sm:$0xff] %v1958
    %1975 = vst [vmem:[#allocation8 + $0x38] sm:$0xff] %v1959
    %1976 = vst [vmem:[#allocation8 + $0x40] sm:$0xff] %v1960
    %1977 = vst [vmem:[#allocation8 + $0x48] sm:$0xff] %v1961
    %1978 = vst [vmem:[#allocation8 + $0x50] sm:$0xff] %v1962
    %1979 = vst [vmem:[#allocation8 + $0x58] sm:$0xff] %v1963
    %1980 = vst [vmem:[#allocation8 + $0x60] sm:$0xff] %v1964
    %1981 = vst [vmem:[#allocation8 + $0x68] sm:$0xff] %v1965
    %1982 = vst [vmem:[#allocation8 + $0x70] sm:$0xff] %v1966
    %1983 = vst [vmem:[#allocation8 + $0x78] sm:$0xff] %v1967
    // Predicated region
    $region26: #{tpu_custom_call.1} parent=1 // pred_check
      _
    $region27: #{tpu_custom_call.1} parent=1 // pred_check_branch
      %1985 = sbr.rel (0) target = $region29
    $region28: #{tpu_custom_call.1} parent=1 // pred_region
      %s1987 = ssub.s32 2048, 2048
      %1988 = vsyncadd [#allocation4], %s1987
      %s1989 = sshll.u32 [#allocation8], 4
      %s1990 = int_to_ptr.vmem [resolvable:$true] %s1989
      %1995 = dma.vmem_to_hbm [thread:$0]  %s1990, 2048, %s3, [#allocation4], 128, 128, 8
    $region29: #{tpu_custom_call.1} parent=1 // pred_fallthru
      _
    // Predicated region
    $region30: #{tpu_custom_call.1} parent=1 // pred_check
      _
    $region31: #{tpu_custom_call.1} parent=1 // pred_check_branch
      %1997 = sbr.rel (0) target = $region33
    $region32: #{tpu_custom_call.1} parent=1 // pred_region
      %1998 = dma.done [#allocation4], 2048
    $region33: #{tpu_custom_call.1} parent=1 // pred_fallthru
      _
    %1999 = vsyncpa [#allocation3], 1
    %2000 = vsyncpa [#allocation6], 1
    %2001 = vsyncpa [#allocation4], 1

</llo_original>
